<compile_context>
chip_gen: v7x
topology: tpu7x:2x2x1
jax: 0.10.0
libtpu: 0.0.40
codegen_flags: <defaults>
</compile_context>

<pallas_src>
import jax
import jax.numpy as jnp
from jax.experimental import pallas as pl
from jax.experimental.pallas import tpu as pltpu

LN_EPS = 1e-5  # PyTorch nn.LayerNorm default
# Explicit scoped-VMEM budget.  <= v7x physical (64 MiB); re-derive per
# generation if block shapes grow (128 MiB physical on v5e/v6e).
VMEM_LIMIT_BYTES = 64 * 1024 * 1024


def _layernorm(x, gamma, beta):
    mu = jnp.mean(x, axis=-1, keepdims=True)
    var = jnp.mean((x - mu) ** 2, axis=-1, keepdims=True)
    return (x - mu) * jax.lax.rsqrt(var + LN_EPS) * gamma + beta


def _gelu_exact(x):
    # nn.GELU() default = exact erf formulation.
    return 0.5 * x * (1.0 + jax.lax.erf(x * 0.7071067811865476))


def transformer_block_kernel(x_ref, g1_ref, b1_ref,
                             wqkv_ref, bqkv_ref, wproj_ref, bproj_ref,
                             g2_ref, b2_ref,
                             w1_ref, bb1_ref, w2_ref, bb2_ref,
                             o_ref, acc_ref, ln1_ref):
    h_idx = pl.program_id(1)                       # head index (reduction axis)
    num_heads = pl.num_programs(1)
    head_dim = wqkv_ref.shape[2] // 3
    seq = x_ref.shape[1]                           # static

    @pl.when(h_idx == 0)
    def _init():
        x = x_ref[0]                               # (S, D) f32 residual stream
        # LN1 once per batch row (f32 math), cached as bf16 MXU operand.
        ln1_ref[...] = _layernorm(x, g1_ref[...], b1_ref[...]).astype(jnp.bfloat16)
        # Attention accumulator starts at residual + output-projection bias.
        acc_ref[...] = x + bproj_ref[...]

    # --- this head's QKV projection: bf16 operands, f32 accumulation ---
    qkv = jnp.dot(ln1_ref[...], wqkv_ref[0],
                  preferred_element_type=jnp.float32) + bqkv_ref[0]   # (S, 3*hd)
    scale = 1.0 / (head_dim ** 0.5)
    q = (qkv[:, :head_dim] * scale).astype(jnp.bfloat16)   # fold 1/sqrt(hd) into q
    k = qkv[:, head_dim:2 * head_dim].astype(jnp.bfloat16)
    v = qkv[:, 2 * head_dim:].astype(jnp.bfloat16)

    # causal scores via NT contraction (no explicit transpose of k)
    scores = jax.lax.dot_general(q, k, (((1,), (1,)), ((), ())),
                                 preferred_element_type=jnp.float32)  # (S, S)
    row = jax.lax.broadcasted_iota(jnp.int32, (seq, seq), 0)
    col = jax.lax.broadcasted_iota(jnp.int32, (seq, seq), 1)
    scores = jnp.where(col <= row, scores, -jnp.inf)        # triu(diag=1) masked

    m = jnp.max(scores, axis=-1, keepdims=True)
    e = jnp.exp(scores - m)
    p = e * pl.reciprocal(jnp.sum(e, axis=-1, keepdims=True), approx=True)

    ctx = jnp.dot(p.astype(jnp.bfloat16), v,
                  preferred_element_type=jnp.float32)                 # (S, hd)
    # fused "concat + output projection": rank-hd update per head
    acc_ref[...] += jnp.dot(ctx.astype(jnp.bfloat16), wproj_ref[0],
                            preferred_element_type=jnp.float32)

    @pl.when(h_idx == num_heads - 1)
    def _epilogue():
        x1 = acc_ref[...]                          # attn out + residual (dropout = id)
        h2 = _layernorm(x1, g2_ref[...], b2_ref[...]).astype(jnp.bfloat16)
        f1 = jnp.dot(h2, w1_ref[...], preferred_element_type=jnp.float32) + bb1_ref[...]
        f1 = _gelu_exact(f1).astype(jnp.bfloat16)
        f2 = jnp.dot(f1, w2_ref[...], preferred_element_type=jnp.float32) + bb2_ref[...]
        o_ref[0] = x1 + f2                         # residual (dropout = identity)


def final_kernel(x_ref, g_ref, b_ref, w_ref, o_ref, ln_ref):
    @pl.when(pl.program_id(1) == 0)
    def _init():
        # Final LayerNorm computed once per batch row, cached for all vocab tiles.
        ln_ref[...] = _layernorm(x_ref[0], g_ref[...], b_ref[...]).astype(jnp.bfloat16)
    o_ref[0] = jnp.dot(ln_ref[...], w_ref[...], preferred_element_type=jnp.float32)


def run_block(x, blk):
    B, S, D = x.shape
    H = blk["w_qkv"].shape[0]

    in_specs = [
        pl.BlockSpec((1, S, D), lambda b, h: (b, 0, 0)),                       # x
        pl.BlockSpec(blk["ln1_g"].shape, lambda b, h: (0, 0)),
        pl.BlockSpec(blk["ln1_b"].shape, lambda b, h: (0, 0)),
        pl.BlockSpec((1,) + blk["w_qkv"].shape[1:], lambda b, h: (h, 0, 0)),   # (1,D,3hd)
        pl.BlockSpec((1,) + blk["b_qkv"].shape[1:], lambda b, h: (h, 0, 0)),   # (1,1,3hd)
        pl.BlockSpec((1,) + blk["w_proj"].shape[1:], lambda b, h: (h, 0, 0)),  # (1,hd,D)
        pl.BlockSpec(blk["b_proj"].shape, lambda b, h: (0, 0)),
        pl.BlockSpec(blk["ln2_g"].shape, lambda b, h: (0, 0)),
        pl.BlockSpec(blk["ln2_b"].shape, lambda b, h: (0, 0)),
        pl.BlockSpec(blk["w_fc1"].shape, lambda b, h: (0, 0)),
        pl.BlockSpec(blk["b_fc1"].shape, lambda b, h: (0, 0)),
        pl.BlockSpec(blk["w_fc2"].shape, lambda b, h: (0, 0)),
        pl.BlockSpec(blk["b_fc2"].shape, lambda b, h: (0, 0)),
    ]
    weights = [blk["ln1_g"], blk["ln1_b"], blk["w_qkv"], blk["b_qkv"],
               blk["w_proj"], blk["b_proj"], blk["ln2_g"], blk["ln2_b"],
               blk["w_fc1"], blk["b_fc1"], blk["w_fc2"], blk["b_fc2"]]

    return pl.pallas_call(
        transformer_block_kernel,
        out_shape=jax.ShapeDtypeStruct((B, S, D), jnp.float32),
        grid=(B, H),
        in_specs=in_specs,
        out_specs=pl.BlockSpec((1, S, D), lambda b, h: (b, 0, 0)),
        scratch_shapes=[pltpu.VMEM((S, D), jnp.float32),    # attention/residual accumulator
                        pltpu.VMEM((S, D), jnp.bfloat16)],  # cached LN1 output
        input_output_aliases={0: 0},                        # x buffer reused for output
        compiler_params=pltpu.CompilerParams(
            dimension_semantics=("parallel", "arbitrary"),
            vmem_limit_bytes=VMEM_LIMIT_BYTES),
    )(x, *weights)


def _pick_vocab_tile(V, target=1024):
    # Largest multiple of 128 dividing V (capped at `target`); if V is not a
    # multiple of 128 (tiny test vocab), fall back to the full extent.
    if V % 128 != 0:
        return V
    tv = 128
    for cand in range(128, min(target, V) + 1, 128):
        if V % cand == 0:
            tv = cand
    return tv


def run_final(x, gamma, beta, w_out):
    B, S, D = x.shape
    V = w_out.shape[1]
    TV = _pick_vocab_tile(V)
    return pl.pallas_call(
        final_kernel,
        out_shape=jax.ShapeDtypeStruct((B, S, V), jnp.float32),
        grid=(B, V // TV),
        in_specs=[pl.BlockSpec((1, S, D), lambda b, j: (b, 0, 0)),
                  pl.BlockSpec(gamma.shape, lambda b, j: (0, 0)),
                  pl.BlockSpec(beta.shape, lambda b, j: (0, 0)),
                  pl.BlockSpec((D, TV), lambda b, j: (0, j))],
        out_specs=pl.BlockSpec((1, S, TV), lambda b, j: (b, 0, j)),
        scratch_shapes=[pltpu.VMEM((S, D), jnp.bfloat16)],  # cached final-LN output
        compiler_params=pltpu.CompilerParams(
            dimension_semantics=("parallel", "arbitrary"),
            vmem_limit_bytes=VMEM_LIMIT_BYTES),
    )(x, gamma, beta, w_out)


def init_params(key, vocab, max_len, emb, num_layers, num_heads):
    hd = emb // num_heads

    def nrm(k, shape, scale=0.02):
        return (scale * jax.random.normal(k, shape)).astype(jnp.float32)

    keys = jax.random.split(key, 3)
    params = {
        "tok_emb": nrm(keys[0], (vocab, emb)),
        "pos_emb": nrm(keys[1], (max_len, emb)),
        "lnf_g": jnp.ones((1, emb), jnp.float32),
        "lnf_b": jnp.zeros((1, emb), jnp.float32),
        "w_out": nrm(keys[2], (emb, vocab)).astype(jnp.bfloat16),  # final_layer bias=False
        "blocks": [],
    }
    for i in range(num_layers):
        ks = jax.random.split(jax.random.fold_in(key, i + 100), 8)
        # Module layout: qkv columns = per-head interleaved [q_h|k_h|v_h]
        # blocks of 3*hd (matches reshape(B,S,H,3*hd).chunk(3) in the spec).
        # Reorganized host-side into per-head slabs (H, D, 3*hd) so the kernel
        # never slices lanes at non-aligned per-head offsets.
        w_qkv = nrm(ks[0], (emb, 3 * emb)).reshape(emb, num_heads, 3 * hd)
        w_qkv = jnp.swapaxes(w_qkv, 0, 1).astype(jnp.bfloat16)          # (H, D, 3*hd)
        b_qkv = nrm(ks[1], (1, 3 * emb)).reshape(num_heads, 1, 3 * hd)  # f32
        # Output projection stored as per-head slabs (H, hd, D): ctx columns
        # are head-major, so out = sum_h ctx_h @ w_proj[h].
        w_proj = nrm(ks[2], (emb, emb)).reshape(num_heads, hd, emb).astype(jnp.bfloat16)
        params["blocks"].append({
            "ln1_g": jnp.ones((1, emb), jnp.float32),
            "ln1_b": jnp.zeros((1, emb), jnp.float32),
            "w_qkv": w_qkv,
            "b_qkv": b_qkv,
            "w_proj": w_proj,
            "b_proj": nrm(ks[3], (1, emb)),
            "ln2_g": jnp.ones((1, emb), jnp.float32),
            "ln2_b": jnp.zeros((1, emb), jnp.float32),
            "w_fc1": nrm(ks[4], (emb, 2 * emb)).astype(jnp.bfloat16),
            "b_fc1": nrm(ks[5], (1, 2 * emb)),
            "w_fc2": nrm(ks[6], (2 * emb, emb)).astype(jnp.bfloat16),
            "b_fc2": nrm(ks[7], (1, emb)),
        })
    return params


@jax.jit
def gpt2_forward(token_ids, params):
    S = token_ids.shape[1]
    # Embedding lookup (gather) stays in plain JAX glue.
    x = params["tok_emb"][token_ids] + params["pos_emb"][:S][None, :, :]
    for blk in params["blocks"]:
        x = run_block(x, blk)
    return run_final(x, params["lnf_g"], params["lnf_b"], params["w_out"])


@jax.jit
def gpt2_reference(token_ids, params):
    # Pure-JAX reference mirroring the kernel math (bf16 matmul operands,
    # f32 accumulation); used only as a correctness sanity check.
    S = token_ids.shape[1]
    x = params["tok_emb"][token_ids] + params["pos_emb"][:S][None, :, :]
    for blk in params["blocks"]:
        H, D, threehd = blk["w_qkv"].shape
        hd = threehd // 3
        h1 = _layernorm(x, blk["ln1_g"], blk["ln1_b"]).astype(jnp.bfloat16)
        out = x + blk["b_proj"]
        for hh in range(H):
            qkv = jnp.einsum("bsd,de->bse", h1, blk["w_qkv"][hh],
                             preferred_element_type=jnp.float32) + blk["b_qkv"][hh]
            q = (qkv[..., :hd] * (1.0 / hd ** 0.5)).astype(jnp.bfloat16)
            k = qkv[..., hd:2 * hd].astype(jnp.bfloat16)
            v = qkv[..., 2 * hd:].astype(jnp.bfloat16)
            sc = jnp.einsum("bqe,bke->bqk", q, k, preferred_element_type=jnp.float32)
            mask = jnp.tril(jnp.ones((S, S), bool))
            sc = jnp.where(mask, sc, -jnp.inf)
            p = jax.nn.softmax(sc, axis=-1)
            ctx = jnp.einsum("bqk,bke->bqe", p.astype(jnp.bfloat16), v,
                             preferred_element_type=jnp.float32)
            out = out + jnp.einsum("bse,ed->bsd", ctx.astype(jnp.bfloat16),
                                   blk["w_proj"][hh],
                                   preferred_element_type=jnp.float32)
        x = out
        h2 = _layernorm(x, blk["ln2_g"], blk["ln2_b"]).astype(jnp.bfloat16)
        f1 = jnp.dot(h2, blk["w_fc1"], preferred_element_type=jnp.float32) + blk["b_fc1"]
        f1 = _gelu_exact(f1).astype(jnp.bfloat16)
        x = x + jnp.dot(f1, blk["w_fc2"], preferred_element_type=jnp.float32) + blk["b_fc2"]
    hf = _layernorm(x, params["lnf_g"], params["lnf_b"]).astype(jnp.bfloat16)
    return jnp.dot(hf, params["w_out"], preferred_element_type=jnp.float32)


if __name__ == "__main__":
    VOCAB, MAX_LEN, EMB, HEADS, LAYERS = 64, 16, 32, 4, 2
    B, S = 2, 8
    key = jax.random.PRNGKey(0)
    k_params, k_ids = jax.random.split(key)
    params = init_params(k_params, VOCAB, MAX_LEN, EMB, LAYERS, HEADS)
    token_ids = jax.random.randint(k_ids, (B, S), 0, VOCAB)

    logits = gpt2_forward(token_ids, params)
    jax.block_until_ready(logits)
    assert logits.shape == (B, S, VOCAB), logits.shape
    assert bool(jnp.all(jnp.isfinite(logits)))

    ref = gpt2_reference(token_ids, params)
    max_err = float(jnp.max(jnp.abs(logits - ref)))
    assert max_err < 3e-2, f"max abs error vs reference: {max_err}"
    print("KERNEL_OK")
</pallas_src>

<mosaic_0001>
module attributes {stable_mosaic.version = 11 : i64} {
  func.func @transformer_block_kernel(%arg0: i32, %arg1: i32, %arg2: memref<1x8x32xf32, #tpu.memory_space<vmem>>, %arg3: memref<1x32xf32, #tpu.memory_space<vmem>>, %arg4: memref<1x32xf32, #tpu.memory_space<vmem>>, %arg5: memref<1x32x24xbf16, #tpu.memory_space<vmem>>, %arg6: memref<1x1x24xf32, #tpu.memory_space<vmem>>, %arg7: memref<1x8x32xbf16, #tpu.memory_space<vmem>>, %arg8: memref<1x32xf32, #tpu.memory_space<vmem>>, %arg9: memref<1x32xf32, #tpu.memory_space<vmem>>, %arg10: memref<1x32xf32, #tpu.memory_space<vmem>>, %arg11: memref<32x64xbf16, #tpu.memory_space<vmem>>, %arg12: memref<1x64xf32, #tpu.memory_space<vmem>>, %arg13: memref<64x32xbf16, #tpu.memory_space<vmem>>, %arg14: memref<1x32xf32, #tpu.memory_space<vmem>>, %arg15: memref<1x8x32xf32, #tpu.memory_space<vmem>>, %arg16: memref<8x32xf32, #tpu.memory_space<vmem>>, %arg17: memref<8x32xbf16, #tpu.memory_space<vmem>>) attributes {dimension_semantics = [#tpu.dimension_semantics<parallel>, #tpu.dimension_semantics<arbitrary>], iteration_bounds = array<i64: 2, 4>, scalar_prefetch = 0 : i64, scratch_operands = 2 : i64, tpu.core_type = #tpu.core_type<tc>, window_params = [{transform_indices = @transform_0, window_bounds = array<i64: 1, 8, 32>}, {pipeline_mode = #tpu.pipeline_mode<synchronous>, transform_indices = @transform_1, window_bounds = array<i64: 1, 32>}, {pipeline_mode = #tpu.pipeline_mode<synchronous>, transform_indices = @transform_2, window_bounds = array<i64: 1, 32>}, {transform_indices = @transform_3, window_bounds = array<i64: 1, 32, 24>}, {transform_indices = @transform_4, window_bounds = array<i64: 1, 1, 24>}, {transform_indices = @transform_5, window_bounds = array<i64: 1, 8, 32>}, {pipeline_mode = #tpu.pipeline_mode<synchronous>, transform_indices = @transform_6, window_bounds = array<i64: 1, 32>}, {pipeline_mode = #tpu.pipeline_mode<synchronous>, transform_indices = @transform_7, window_bounds = array<i64: 1, 32>}, {pipeline_mode = #tpu.pipeline_mode<synchronous>, transform_indices = @transform_8, window_bounds = array<i64: 1, 32>}, {pipeline_mode = #tpu.pipeline_mode<synchronous>, transform_indices = @transform_9, window_bounds = array<i64: 32, 64>}, {pipeline_mode = #tpu.pipeline_mode<synchronous>, transform_indices = @transform_10, window_bounds = array<i64: 1, 64>}, {pipeline_mode = #tpu.pipeline_mode<synchronous>, transform_indices = @transform_11, window_bounds = array<i64: 64, 32>}, {pipeline_mode = #tpu.pipeline_mode<synchronous>, transform_indices = @transform_12, window_bounds = array<i64: 1, 32>}, {transform_indices = @transform_13, window_bounds = array<i64: 1, 8, 32>}]} {
    %c0_i32 = arith.constant 0 : i32
    %0 = arith.cmpi eq, %arg1, %c0_i32 : i32
    %1 = arith.extui %0 : i1 to i32
    %c0_i32_0 = arith.constant 0 : i32
    %2 = arith.cmpi ne, %1, %c0_i32_0 : i32
    scf.if %2 {
      %c0_23 = arith.constant 0 : index
      %c0_24 = arith.constant 0 : index
      %c0_25 = arith.constant 0 : index
      %47 = vector.load %arg2[%c0_23, %c0_24, %c0_25] : memref<1x8x32xf32, #tpu.memory_space<vmem>>, vector<1x8x32xf32>
      %48 = vector.shape_cast %47 : vector<1x8x32xf32> to vector<8x32xf32>
      %c0_26 = arith.constant 0 : index
      %c0_27 = arith.constant 0 : index
      %49 = vector.load %arg3[%c0_26, %c0_27] : memref<1x32xf32, #tpu.memory_space<vmem>>, vector<1x32xf32>
      %c0_28 = arith.constant 0 : index
      %c0_29 = arith.constant 0 : index
      %50 = vector.load %arg4[%c0_28, %c0_29] : memref<1x32xf32, #tpu.memory_space<vmem>>, vector<1x32xf32>
      %cst_30 = arith.constant dense<0.000000e+00> : vector<8xf32>
      %51 = vector.multi_reduction <add>, %48, %cst_30 [1] : vector<8x32xf32> to vector<8xf32>
      %52 = vector.shape_cast %51 : vector<8xf32> to vector<8x1xf32>
      %cst_31 = arith.constant 3.200000e+01 : f32
      %53 = vector.broadcast %cst_31 : f32 to vector<8x1xf32>
      %54 = arith.divf %52, %53 : vector<8x1xf32>
      %55 = vector.broadcast %54 : vector<8x1xf32> to vector<8x32xf32>
      %56 = arith.subf %48, %55 : vector<8x32xf32>
      %57 = arith.mulf %56, %56 : vector<8x32xf32>
      %cst_32 = arith.constant dense<0.000000e+00> : vector<8xf32>
      %58 = vector.multi_reduction <add>, %57, %cst_32 [1] : vector<8x32xf32> to vector<8xf32>
      %59 = vector.shape_cast %58 : vector<8xf32> to vector<8x1xf32>
      %cst_33 = arith.constant 3.200000e+01 : f32
      %60 = vector.broadcast %cst_33 : f32 to vector<8x1xf32>
      %61 = arith.divf %59, %60 : vector<8x1xf32>
      %62 = vector.broadcast %54 : vector<8x1xf32> to vector<8x32xf32>
      %63 = arith.subf %48, %62 : vector<8x32xf32>
      %cst_34 = arith.constant 9.99999974E-6 : f32
      %64 = vector.broadcast %cst_34 : f32 to vector<8x1xf32>
      %65 = arith.addf %61, %64 : vector<8x1xf32>
      %66 = math.rsqrt %65 : vector<8x1xf32>
      %67 = vector.broadcast %66 : vector<8x1xf32> to vector<8x32xf32>
      %68 = arith.mulf %63, %67 : vector<8x32xf32>
      %69 = vector.broadcast %49 : vector<1x32xf32> to vector<8x32xf32>
      %70 = arith.mulf %68, %69 : vector<8x32xf32>
      %71 = vector.broadcast %50 : vector<1x32xf32> to vector<8x32xf32>
      %72 = arith.addf %70, %71 : vector<8x32xf32>
      %73 = arith.truncf %72 : vector<8x32xf32> to vector<8x32xbf16>
      %c0_35 = arith.constant 0 : index
      %c0_36 = arith.constant 0 : index
      %74 = vector.load %arg17[%c0_35, %c0_36] : memref<8x32xbf16, #tpu.memory_space<vmem>>, vector<8x32xbf16>
      tpu.vector_store %arg17[%c0_35, %c0_36], %73 {strides = array<i32>} : memref<8x32xbf16, #tpu.memory_space<vmem>>, vector<8x32xbf16>,
      %c0_37 = arith.constant 0 : index
      %c0_38 = arith.constant 0 : index
      %75 = vector.load %arg8[%c0_37, %c0_38] : memref<1x32xf32, #tpu.memory_space<vmem>>, vector<1x32xf32>
      %76 = vector.broadcast %75 : vector<1x32xf32> to vector<8x32xf32>
      %77 = arith.addf %48, %76 : vector<8x32xf32>
      %c0_39 = arith.constant 0 : index
      %c0_40 = arith.constant 0 : index
      %78 = vector.load %arg16[%c0_39, %c0_40] : memref<8x32xf32, #tpu.memory_space<vmem>>, vector<8x32xf32>
      tpu.vector_store %arg16[%c0_39, %c0_40], %77 {strides = array<i32>} : memref<8x32xf32, #tpu.memory_space<vmem>>, vector<8x32xf32>,
    } else {
    }
    %c0 = arith.constant 0 : index
    %c0_1 = arith.constant 0 : index
    %3 = vector.load %arg17[%c0, %c0_1] : memref<8x32xbf16, #tpu.memory_space<vmem>>, vector<8x32xbf16>
    %c0_2 = arith.constant 0 : index
    %c0_3 = arith.constant 0 : index
    %c0_4 = arith.constant 0 : index
    %4 = vector.load %arg5[%c0_2, %c0_3, %c0_4] : memref<1x32x24xbf16, #tpu.memory_space<vmem>>, vector<1x32x24xbf16>
    %5 = vector.shape_cast %4 : vector<1x32x24xbf16> to vector<32x24xbf16>
    %cst = arith.constant dense<0.000000e+00> : vector<8x24xf32>
    %6 = tpu.matmul %3, %5, %cst {dimension_numbers = #tpu.dot_dimension_numbers<[1], [0], [0], [1], [0, 0, 1, 1], [], []>} : vector<8x32xbf16>, vector<32x24xbf16>, vector<8x24xf32> -> vector<8x24xf32>
    %c0_5 = arith.constant 0 : index
    %c0_6 = arith.constant 0 : index
    %c0_7 = arith.constant 0 : index
    %7 = vector.load %arg6[%c0_5, %c0_6, %c0_7] : memref<1x1x24xf32, #tpu.memory_space<vmem>>, vector<1x1x24xf32>
    %8 = vector.shape_cast %7 : vector<1x1x24xf32> to vector<1x24xf32>
    %9 = vector.broadcast %8 : vector<1x24xf32> to vector<8x24xf32>
    %10 = arith.addf %6, %9 : vector<8x24xf32>
    %11 = vector.extract_strided_slice %10 {offsets = [0, 0], sizes = [8, 8], strides = [1, 1]} : vector<8x24xf32> to vector<8x8xf32>
    %cst_8 = arith.constant 0.353553385 : f32
    %12 = vector.broadcast %cst_8 : f32 to vector<8x8xf32>
    %13 = arith.mulf %11, %12 : vector<8x8xf32>
    %14 = arith.truncf %13 : vector<8x8xf32> to vector<8x8xbf16>
    %15 = vector.extract_strided_slice %10 {offsets = [0, 8], sizes = [8, 8], strides = [1, 1]} : vector<8x24xf32> to vector<8x8xf32>
    %16 = arith.truncf %15 : vector<8x8xf32> to vector<8x8xbf16>
    %17 = vector.extract_strided_slice %10 {offsets = [0, 16], sizes = [8, 8], strides = [1, 1]} : vector<8x24xf32> to vector<8x8xf32>
    %18 = arith.truncf %17 : vector<8x8xf32> to vector<8x8xbf16>
    %cst_9 = arith.constant dense<0.000000e+00> : vector<8x8xf32>
    %19 = tpu.matmul %14, %16, %cst_9 {dimension_numbers = #tpu.dot_dimension_numbers<[1], [1], [0], [0], [0, 0, 1, 0], [], []>} : vector<8x8xbf16>, vector<8x8xbf16>, vector<8x8xf32> -> vector<8x8xf32>
    %20 = tpu.iota {dimensions = array<i32: 0>} : vector<8x8xi32>
    %21 = tpu.iota {dimensions = array<i32: 1>} : vector<8x8xi32>
    %22 = arith.cmpi sle, %21, %20 : vector<8x8xi32>
    %cst_10 = arith.constant 0xFF800000 : f32
    %23 = vector.broadcast %cst_10 : f32 to vector<8x8xf32>
    %24 = arith.select %22, %19, %23 : vector<8x8xi1>, vector<8x8xf32>
    %cst_11 = arith.constant dense<0xFF800000> : vector<8xf32>
    %25 = vector.multi_reduction <maximumf>, %24, %cst_11 [1] : vector<8x8xf32> to vector<8xf32>
    %26 = vector.shape_cast %25 : vector<8xf32> to vector<8x1xf32>
    %27 = vector.broadcast %26 : vector<8x1xf32> to vector<8x8xf32>
    %28 = arith.subf %24, %27 : vector<8x8xf32>
    %29 = math.exp %28 : vector<8x8xf32>
    %cst_12 = arith.constant dense<0.000000e+00> : vector<8xf32>
    %30 = vector.multi_reduction <add>, %29, %cst_12 [1] : vector<8x8xf32> to vector<8xf32>
    %31 = vector.shape_cast %30 : vector<8xf32> to vector<8x1xf32>
    %32 = tpu.reciprocal %31 {approx = true} : vector<8x1xf32> -> vector<8x1xf32>
    %33 = vector.broadcast %32 : vector<8x1xf32> to vector<8x8xf32>
    %34 = arith.mulf %29, %33 : vector<8x8xf32>
    %35 = arith.truncf %34 : vector<8x8xf32> to vector<8x8xbf16>
    %cst_13 = arith.constant dense<0.000000e+00> : vector<8x8xf32>
    %36 = tpu.matmul %35, %18, %cst_13 {dimension_numbers = #tpu.dot_dimension_numbers<[1], [0], [0], [1], [0, 0, 1, 1], [], []>} : vector<8x8xbf16>, vector<8x8xbf16>, vector<8x8xf32> -> vector<8x8xf32>
    %c0_14 = arith.constant 0 : index
    %c0_15 = arith.constant 0 : index
    %37 = vector.load %arg16[%c0_14, %c0_15] : memref<8x32xf32, #tpu.memory_space<vmem>>, vector<8x32xf32>
    %38 = arith.truncf %36 : vector<8x8xf32> to vector<8x8xbf16>
    %c0_16 = arith.constant 0 : index
    %c0_17 = arith.constant 0 : index
    %c0_18 = arith.constant 0 : index
    %39 = vector.load %arg7[%c0_16, %c0_17, %c0_18] : memref<1x8x32xbf16, #tpu.memory_space<vmem>>, vector<1x8x32xbf16>
    %40 = vector.shape_cast %39 : vector<1x8x32xbf16> to vector<8x32xbf16>
    %cst_19 = arith.constant dense<0.000000e+00> : vector<8x32xf32>
    %41 = tpu.matmul %38, %40, %cst_19 {dimension_numbers = #tpu.dot_dimension_numbers<[1], [0], [0], [1], [0, 0, 1, 1], [], []>} : vector<8x8xbf16>, vector<8x32xbf16>, vector<8x32xf32> -> vector<8x32xf32>
    %42 = arith.addf %37, %41 : vector<8x32xf32>
    %c0_20 = arith.constant 0 : index
    %c0_21 = arith.constant 0 : index
    %43 = vector.load %arg16[%c0_20, %c0_21] : memref<8x32xf32, #tpu.memory_space<vmem>>, vector<8x32xf32>
    tpu.vector_store %arg16[%c0_20, %c0_21], %42 {strides = array<i32>} : memref<8x32xf32, #tpu.memory_space<vmem>>, vector<8x32xf32>,
    %c3_i32 = arith.constant 3 : i32
    %44 = arith.cmpi eq, %arg1, %c3_i32 : i32
    %45 = arith.extui %44 : i1 to i32
    %c0_i32_22 = arith.constant 0 : i32
    %46 = arith.cmpi ne, %45, %c0_i32_22 : i32
    scf.if %46 {
      %c0_23 = arith.constant 0 : index
      %c0_24 = arith.constant 0 : index
      %47 = vector.load %arg16[%c0_23, %c0_24] : memref<8x32xf32, #tpu.memory_space<vmem>>, vector<8x32xf32>
      %c0_25 = arith.constant 0 : index
      %c0_26 = arith.constant 0 : index
      %48 = vector.load %arg9[%c0_25, %c0_26] : memref<1x32xf32, #tpu.memory_space<vmem>>, vector<1x32xf32>
      %c0_27 = arith.constant 0 : index
      %c0_28 = arith.constant 0 : index
      %49 = vector.load %arg10[%c0_27, %c0_28] : memref<1x32xf32, #tpu.memory_space<vmem>>, vector<1x32xf32>
      %cst_29 = arith.constant dense<0.000000e+00> : vector<8xf32>
      %50 = vector.multi_reduction <add>, %47, %cst_29 [1] : vector<8x32xf32> to vector<8xf32>
      %51 = vector.shape_cast %50 : vector<8xf32> to vector<8x1xf32>
      %cst_30 = arith.constant 3.200000e+01 : f32
      %52 = vector.broadcast %cst_30 : f32 to vector<8x1xf32>
      %53 = arith.divf %51, %52 : vector<8x1xf32>
      %54 = vector.broadcast %53 : vector<8x1xf32> to vector<8x32xf32>
      %55 = arith.subf %47, %54 : vector<8x32xf32>
      %56 = arith.mulf %55, %55 : vector<8x32xf32>
      %cst_31 = arith.constant dense<0.000000e+00> : vector<8xf32>
      %57 = vector.multi_reduction <add>, %56, %cst_31 [1] : vector<8x32xf32> to vector<8xf32>
      %58 = vector.shape_cast %57 : vector<8xf32> to vector<8x1xf32>
      %cst_32 = arith.constant 3.200000e+01 : f32
      %59 = vector.broadcast %cst_32 : f32 to vector<8x1xf32>
      %60 = arith.divf %58, %59 : vector<8x1xf32>
      %61 = vector.broadcast %53 : vector<8x1xf32> to vector<8x32xf32>
      %62 = arith.subf %47, %61 : vector<8x32xf32>
      %cst_33 = arith.constant 9.99999974E-6 : f32
      %63 = vector.broadcast %cst_33 : f32 to vector<8x1xf32>
      %64 = arith.addf %60, %63 : vector<8x1xf32>
      %65 = math.rsqrt %64 : vector<8x1xf32>
      %66 = vector.broadcast %65 : vector<8x1xf32> to vector<8x32xf32>
      %67 = arith.mulf %62, %66 : vector<8x32xf32>
      %68 = vector.broadcast %48 : vector<1x32xf32> to vector<8x32xf32>
      %69 = arith.mulf %67, %68 : vector<8x32xf32>
      %70 = vector.broadcast %49 : vector<1x32xf32> to vector<8x32xf32>
      %71 = arith.addf %69, %70 : vector<8x32xf32>
      %72 = arith.truncf %71 : vector<8x32xf32> to vector<8x32xbf16>
      %c0_34 = arith.constant 0 : index
      %c0_35 = arith.constant 0 : index
      %73 = vector.load %arg11[%c0_34, %c0_35] : memref<32x64xbf16, #tpu.memory_space<vmem>>, vector<32x64xbf16>
      %cst_36 = arith.constant dense<0.000000e+00> : vector<8x64xf32>
      %74 = tpu.matmul %72, %73, %cst_36 {dimension_numbers = #tpu.dot_dimension_numbers<[1], [0], [0], [1], [0, 0, 1, 1], [], []>} : vector<8x32xbf16>, vector<32x64xbf16>, vector<8x64xf32> -> vector<8x64xf32>
      %c0_37 = arith.constant 0 : index
      %c0_38 = arith.constant 0 : index
      %75 = vector.load %arg12[%c0_37, %c0_38] : memref<1x64xf32, #tpu.memory_space<vmem>>, vector<1x64xf32>
      %76 = vector.broadcast %75 : vector<1x64xf32> to vector<8x64xf32>
      %77 = arith.addf %74, %76 : vector<8x64xf32>
      %cst_39 = arith.constant 5.000000e-01 : f32
      %78 = vector.broadcast %cst_39 : f32 to vector<8x64xf32>
      %79 = arith.mulf %78, %77 : vector<8x64xf32>
      %cst_40 = arith.constant 0.707106769 : f32
      %80 = vector.broadcast %cst_40 : f32 to vector<8x64xf32>
      %81 = arith.mulf %77, %80 : vector<8x64xf32>
      %82 = math.erf %81 : vector<8x64xf32>
      %cst_41 = arith.constant 1.000000e+00 : f32
      %83 = vector.broadcast %cst_41 : f32 to vector<8x64xf32>
      %84 = arith.addf %83, %82 : vector<8x64xf32>
      %85 = arith.mulf %79, %84 : vector<8x64xf32>
      %86 = arith.truncf %85 : vector<8x64xf32> to vector<8x64xbf16>
      %c0_42 = arith.constant 0 : index
      %c0_43 = arith.constant 0 : index
      %87 = vector.load %arg13[%c0_42, %c0_43] : memref<64x32xbf16, #tpu.memory_space<vmem>>, vector<64x32xbf16>
      %cst_44 = arith.constant dense<0.000000e+00> : vector<8x32xf32>
      %88 = tpu.matmul %86, %87, %cst_44 {dimension_numbers = #tpu.dot_dimension_numbers<[1], [0], [0], [1], [0, 0, 1, 1], [], []>} : vector<8x64xbf16>, vector<64x32xbf16>, vector<8x32xf32> -> vector<8x32xf32>
      %c0_45 = arith.constant 0 : index
      %c0_46 = arith.constant 0 : index
      %89 = vector.load %arg14[%c0_45, %c0_46] : memref<1x32xf32, #tpu.memory_space<vmem>>, vector<1x32xf32>
      %90 = vector.broadcast %89 : vector<1x32xf32> to vector<8x32xf32>
      %91 = arith.addf %88, %90 : vector<8x32xf32>
      %92 = arith.addf %47, %91 : vector<8x32xf32>
      %c0_47 = arith.constant 0 : index
      %c0_48 = arith.constant 0 : index
      %c0_49 = arith.constant 0 : index
      %93 = vector.load %arg15[%c0_47, %c0_48, %c0_49] : memref<1x8x32xf32, #tpu.memory_space<vmem>>, vector<1x8x32xf32>
      %94 = vector.shape_cast %93 : vector<1x8x32xf32> to vector<8x32xf32>
      %95 = vector.shape_cast %92 : vector<8x32xf32> to vector<1x8x32xf32>
      tpu.vector_store %arg15[%c0_47, %c0_48, %c0_49], %95 {strides = array<i32>} : memref<1x8x32xf32, #tpu.memory_space<vmem>>, vector<1x8x32xf32>,
    } else {
    }
    return
  }
  func.func @transform_0(%arg0: i32, %arg1: i32) -> (i32, i32, i32) {
    %c0_i32 = arith.constant 0 : i32
    %c0_i32_0 = arith.constant 0 : i32
    %c0_i32_1 = arith.constant 0 : i32
    return %arg0, %c0_i32, %c0_i32_0 : i32, i32, i32
  }
  func.func @transform_1(%arg0: i32, %arg1: i32) -> (i32, i32) {
    %c0_i32 = arith.constant 0 : i32
    %c0_i32_0 = arith.constant 0 : i32
    %c0_i32_1 = arith.constant 0 : i32
    return %c0_i32, %c0_i32_0 : i32, i32
  }
  func.func @transform_2(%arg0: i32, %arg1: i32) -> (i32, i32) {
    %c0_i32 = arith.constant 0 : i32
    %c0_i32_0 = arith.constant 0 : i32
    %c0_i32_1 = arith.constant 0 : i32
    return %c0_i32, %c0_i32_0 : i32, i32
  }
  func.func @transform_3(%arg0: i32, %arg1: i32) -> (i32, i32, i32) {
    %c0_i32 = arith.constant 0 : i32
    %c0_i32_0 = arith.constant 0 : i32
    %c0_i32_1 = arith.constant 0 : i32
    return %arg1, %c0_i32, %c0_i32_0 : i32, i32, i32
  }
  func.func @transform_4(%arg0: i32, %arg1: i32) -> (i32, i32, i32) {
    %c0_i32 = arith.constant 0 : i32
    %c0_i32_0 = arith.constant 0 : i32
    %c0_i32_1 = arith.constant 0 : i32
    return %arg1, %c0_i32, %c0_i32_0 : i32, i32, i32
  }
  func.func @transform_5(%arg0: i32, %arg1: i32) -> (i32, i32, i32) {
    %c0_i32 = arith.constant 0 : i32
    %c0_i32_0 = arith.constant 0 : i32
    %c0_i32_1 = arith.constant 0 : i32
    return %arg1, %c0_i32, %c0_i32_0 : i32, i32, i32
  }
  func.func @transform_6(%arg0: i32, %arg1: i32) -> (i32, i32) {
    %c0_i32 = arith.constant 0 : i32
    %c0_i32_0 = arith.constant 0 : i32
    %c0_i32_1 = arith.constant 0 : i32
    return %c0_i32, %c0_i32_0 : i32, i32
  }
  func.func @transform_7(%arg0: i32, %arg1: i32) -> (i32, i32) {
    %c0_i32 = arith.constant 0 : i32
    %c0_i32_0 = arith.constant 0 : i32
    %c0_i32_1 = arith.constant 0 : i32
    return %c0_i32, %c0_i32_0 : i32, i32
  }
  func.func @transform_8(%arg0: i32, %arg1: i32) -> (i32, i32) {
    %c0_i32 = arith.constant 0 : i32
    %c0_i32_0 = arith.constant 0 : i32
    %c0_i32_1 = arith.constant 0 : i32
    return %c0_i32, %c0_i32_0 : i32, i32
  }
  func.func @transform_9(%arg0: i32, %arg1: i32) -> (i32, i32) {
    %c0_i32 = arith.constant 0 : i32
    %c0_i32_0 = arith.constant 0 : i32
    %c0_i32_1 = arith.constant 0 : i32
    return %c0_i32, %c0_i32_0 : i32, i32
  }
  func.func @transform_10(%arg0: i32, %arg1: i32) -> (i32, i32) {
    %c0_i32 = arith.constant 0 : i32
    %c0_i32_0 = arith.constant 0 : i32
    %c0_i32_1 = arith.constant 0 : i32
    return %c0_i32, %c0_i32_0 : i32, i32
  }
  func.func @transform_11(%arg0: i32, %arg1: i32) -> (i32, i32) {
    %c0_i32 = arith.constant 0 : i32
    %c0_i32_0 = arith.constant 0 : i32
    %c0_i32_1 = arith.constant 0 : i32
    return %c0_i32, %c0_i32_0 : i32, i32
  }
  func.func @transform_12(%arg0: i32, %arg1: i32) -> (i32, i32) {
    %c0_i32 = arith.constant 0 : i32
    %c0_i32_0 = arith.constant 0 : i32
    %c0_i32_1 = arith.constant 0 : i32
    return %c0_i32, %c0_i32_0 : i32, i32
  }
  func.func @transform_13(%arg0: i32, %arg1: i32) -> (i32, i32, i32) {
    %c0_i32 = arith.constant 0 : i32
    %c0_i32_0 = arith.constant 0 : i32
    %c0_i32_1 = arith.constant 0 : i32
    return %arg0, %c0_i32, %c0_i32_0 : i32, i32, i32
  }
}

module attributes {stable_mosaic.version = 11 : i64} {
  func.func @final_kernel(%arg0: i32, %arg1: i32, %arg2: memref<1x8x32xf32, #tpu.memory_space<vmem>>, %arg3: memref<1x32xf32, #tpu.memory_space<vmem>>, %arg4: memref<1x32xf32, #tpu.memory_space<vmem>>, %arg5: memref<32x64xbf16, #tpu.memory_space<vmem>>, %arg6: memref<1x8x64xf32, #tpu.memory_space<vmem>>, %arg7: memref<8x32xbf16, #tpu.memory_space<vmem>>) attributes {dimension_semantics = [#tpu.dimension_semantics<parallel>, #tpu.dimension_semantics<arbitrary>], iteration_bounds = array<i64: 2, 1>, scalar_prefetch = 0 : i64, scratch_operands = 1 : i64, tpu.core_type = #tpu.core_type<tc>, window_params = [{transform_indices = @transform_0, window_bounds = array<i64: 1, 8, 32>}, {pipeline_mode = #tpu.pipeline_mode<synchronous>, transform_indices = @transform_1, window_bounds = array<i64: 1, 32>}, {pipeline_mode = #tpu.pipeline_mode<synchronous>, transform_indices = @transform_2, window_bounds = array<i64: 1, 32>}, {transform_indices = @transform_3, window_bounds = array<i64: 32, 64>}, {transform_indices = @transform_4, window_bounds = array<i64: 1, 8, 64>}]} {
    %c0_i32 = arith.constant 0 : i32
    %0 = arith.cmpi eq, %arg1, %c0_i32 : i32
    %1 = arith.extui %0 : i1 to i32
    %c0_i32_0 = arith.constant 0 : i32
    %2 = arith.cmpi ne, %1, %c0_i32_0 : i32
    scf.if %2 {
      %c0_7 = arith.constant 0 : index
      %c0_8 = arith.constant 0 : index
      %c0_9 = arith.constant 0 : index
      %9 = vector.load %arg2[%c0_7, %c0_8, %c0_9] : memref<1x8x32xf32, #tpu.memory_space<vmem>>, vector<1x8x32xf32>
      %10 = vector.shape_cast %9 : vector<1x8x32xf32> to vector<8x32xf32>
      %c0_10 = arith.constant 0 : index
      %c0_11 = arith.constant 0 : index
      %11 = vector.load %arg3[%c0_10, %c0_11] : memref<1x32xf32, #tpu.memory_space<vmem>>, vector<1x32xf32>
      %c0_12 = arith.constant 0 : index
      %c0_13 = arith.constant 0 : index
      %12 = vector.load %arg4[%c0_12, %c0_13] : memref<1x32xf32, #tpu.memory_space<vmem>>, vector<1x32xf32>
      %cst_14 = arith.constant dense<0.000000e+00> : vector<8xf32>
      %13 = vector.multi_reduction <add>, %10, %cst_14 [1] : vector<8x32xf32> to vector<8xf32>
      %14 = vector.shape_cast %13 : vector<8xf32> to vector<8x1xf32>
      %cst_15 = arith.constant 3.200000e+01 : f32
      %15 = vector.broadcast %cst_15 : f32 to vector<8x1xf32>
      %16 = arith.divf %14, %15 : vector<8x1xf32>
      %17 = vector.broadcast %16 : vector<8x1xf32> to vector<8x32xf32>
      %18 = arith.subf %10, %17 : vector<8x32xf32>
      %19 = arith.mulf %18, %18 : vector<8x32xf32>
      %cst_16 = arith.constant dense<0.000000e+00> : vector<8xf32>
      %20 = vector.multi_reduction <add>, %19, %cst_16 [1] : vector<8x32xf32> to vector<8xf32>
      %21 = vector.shape_cast %20 : vector<8xf32> to vector<8x1xf32>
      %cst_17 = arith.constant 3.200000e+01 : f32
      %22 = vector.broadcast %cst_17 : f32 to vector<8x1xf32>
      %23 = arith.divf %21, %22 : vector<8x1xf32>
      %24 = vector.broadcast %16 : vector<8x1xf32> to vector<8x32xf32>
      %25 = arith.subf %10, %24 : vector<8x32xf32>
      %cst_18 = arith.constant 9.99999974E-6 : f32
      %26 = vector.broadcast %cst_18 : f32 to vector<8x1xf32>
      %27 = arith.addf %23, %26 : vector<8x1xf32>
      %28 = math.rsqrt %27 : vector<8x1xf32>
      %29 = vector.broadcast %28 : vector<8x1xf32> to vector<8x32xf32>
      %30 = arith.mulf %25, %29 : vector<8x32xf32>
      %31 = vector.broadcast %11 : vector<1x32xf32> to vector<8x32xf32>
      %32 = arith.mulf %30, %31 : vector<8x32xf32>
      %33 = vector.broadcast %12 : vector<1x32xf32> to vector<8x32xf32>
      %34 = arith.addf %32, %33 : vector<8x32xf32>
      %35 = arith.truncf %34 : vector<8x32xf32> to vector<8x32xbf16>
      %c0_19 = arith.constant 0 : index
      %c0_20 = arith.constant 0 : index
      %36 = vector.load %arg7[%c0_19, %c0_20] : memref<8x32xbf16, #tpu.memory_space<vmem>>, vector<8x32xbf16>
      tpu.vector_store %arg7[%c0_19, %c0_20], %35 {strides = array<i32>} : memref<8x32xbf16, #tpu.memory_space<vmem>>, vector<8x32xbf16>,
    } else {
    }
    %c0 = arith.constant 0 : index
    %c0_1 = arith.constant 0 : index
    %3 = vector.load %arg7[%c0, %c0_1] : memref<8x32xbf16, #tpu.memory_space<vmem>>, vector<8x32xbf16>
    %c0_2 = arith.constant 0 : index
    %c0_3 = arith.constant 0 : index
    %4 = vector.load %arg5[%c0_2, %c0_3] : memref<32x64xbf16, #tpu.memory_space<vmem>>, vector<32x64xbf16>
    %cst = arith.constant dense<0.000000e+00> : vector<8x64xf32>
    %5 = tpu.matmul %3, %4, %cst {dimension_numbers = #tpu.dot_dimension_numbers<[1], [0], [0], [1], [0, 0, 1, 1], [], []>} : vector<8x32xbf16>, vector<32x64xbf16>, vector<8x64xf32> -> vector<8x64xf32>
    %c0_4 = arith.constant 0 : index
    %c0_5 = arith.constant 0 : index
    %c0_6 = arith.constant 0 : index
    %6 = vector.load %arg6[%c0_4, %c0_5, %c0_6] : memref<1x8x64xf32, #tpu.memory_space<vmem>>, vector<1x8x64xf32>
    %7 = vector.shape_cast %6 : vector<1x8x64xf32> to vector<8x64xf32>
    %8 = vector.shape_cast %5 : vector<8x64xf32> to vector<1x8x64xf32>
    tpu.vector_store %arg6[%c0_4, %c0_5, %c0_6], %8 {strides = array<i32>} : memref<1x8x64xf32, #tpu.memory_space<vmem>>, vector<1x8x64xf32>,
    return
  }
  func.func @transform_0(%arg0: i32, %arg1: i32) -> (i32, i32, i32) {
    %c0_i32 = arith.constant 0 : i32
    %c0_i32_0 = arith.constant 0 : i32
    %c0_i32_1 = arith.constant 0 : i32
    return %arg0, %c0_i32, %c0_i32_0 : i32, i32, i32
  }
  func.func @transform_1(%arg0: i32, %arg1: i32) -> (i32, i32) {
    %c0_i32 = arith.constant 0 : i32
    %c0_i32_0 = arith.constant 0 : i32
    %c0_i32_1 = arith.constant 0 : i32
    return %c0_i32, %c0_i32_0 : i32, i32
  }
  func.func @transform_2(%arg0: i32, %arg1: i32) -> (i32, i32) {
    %c0_i32 = arith.constant 0 : i32
    %c0_i32_0 = arith.constant 0 : i32
    %c0_i32_1 = arith.constant 0 : i32
    return %c0_i32, %c0_i32_0 : i32, i32
  }
  func.func @transform_3(%arg0: i32, %arg1: i32) -> (i32, i32) {
    %c0_i32 = arith.constant 0 : i32
    %c0_i32_0 = arith.constant 0 : i32
    return %c0_i32, %arg1 : i32, i32
  }
  func.func @transform_4(%arg0: i32, %arg1: i32) -> (i32, i32, i32) {
    %c0_i32 = arith.constant 0 : i32
    %c0_i32_0 = arith.constant 0 : i32
    return %arg0, %c0_i32, %arg1 : i32, i32, i32
  }
}

</mosaic_0001>

<llo_original>
// kernel: gpt2_forward.5
$region0: #{gpt2_forward.5}
  #allocation0 [shape = 'u32[]', space=smem, size = 0x4, offset = 0x4, fixed_abs, tag = 'smem constant byte address 0x4 - core index']
  #allocation1 [shape = 'u32[144,128]{1,0:T(1,128)}', space=vmem, size = 0x12000, scoped, tag = 'internal scratch']
  #allocation2 [shape = 'bf16[8,32]{1,0:T(8,128)(2,1)}', space=vmem, size = 0x800, scoped, tag = 'scratch operand']
  %s0 = inlined_call_operand.hbm [shape: f32[2,8,32], index: 0, kind: input, shape index: {}]
  %s1 = inlined_call_operand.hbm [shape: f32[1,32], index: 1, kind: input, shape index: {}]
  %s2 = inlined_call_operand.hbm [shape: f32[1,32], index: 2, kind: input, shape index: {}]
  %s3 = inlined_call_operand.hbm [shape: bf16[32,64], index: 3, kind: input, shape index: {}]
  %s4 = inlined_call_operand.hbm [shape: f32[2,8,64], index: 4, kind: output, shape index: {}]
  %s5 = sld [smem:[#allocation0]]
  $region69: #{gpt2_forward.5} parent=0
    _
  %s7 = ssub.s32 1, %s5
  %s8 = scalar_select 0, %s7, %s5
  $region1: #{gpt2_forward.5} parent=0
    #allocation3 [shape = 'u8[8192]{0}', space=vmem, size = 0x2000, scoped, tag = 'input window, operand 0']
    #allocation4 [shape = 's32[2]{0}', space=sflag, size = 0x8, scoped, tag = 'scoped memory for gpt2_forward.5']
    #allocation5 [shape = 's32[2]{0}', space=sflag, size = 0x8, scoped, tag = 'scoped memory for gpt2_forward.5']
    #allocation6 [shape = 'u8[512]{0}', space=vmem, size = 0x400, scoped, tag = 'input window, operand 1, single buffered']
    #allocation7 [shape = 's32[1]{0}', space=sflag, size = 0x4, scoped, tag = 'scoped memory for gpt2_forward.5']
    #allocation8 [shape = 'u8[512]{0}', space=vmem, size = 0x400, scoped, tag = 'input window, operand 2, single buffered']
    #allocation9 [shape = 'u8[8192]{0}', space=vmem, size = 0x2000, scoped, tag = 'input window, operand 3, single buffered']
    #allocation10 [shape = 's32[1]{0}', space=sflag, size = 0x4, scoped, tag = 'scoped memory for gpt2_forward.5']
    #allocation11 [shape = 'u8[8192]{0}', space=vmem, size = 0x2000, scoped, tag = 'output window, operand 0']
    %9 = vsyncpa [#allocation4], 0
    %s10 = scalar_lea.sflag [#allocation4], 1
    %11 = vsyncpa %s10, 0
    %12 = vsyncpa [#allocation7], 0
    %13 = vsyncpa [#allocation10], 0
    %14 = vsyncpa [#allocation5], 0
    %s15 = scalar_lea.sflag [#allocation5], 1
    %16 = vsyncpa %s15, 0
    loop: start=0, step=1, limit=4
    $region2: #{gpt2_forward.5} parent=1 // loop_pre_header
      _
    $region3: #{gpt2_forward.5} parent=1 // loop_header
      %s18 = sphi 0, %s22
      %p19 = scmp.ge.s32.totalorder %s18, 4
      %s25 = sphi 0, %s37
      %s26 = sphi 0, %s33
      %s27 = sphi 0, %s25
      %s28 = sphi 0, %s26
      %s29 = sphi 0, %s27
      %s30 = sphi 0, %s28
      %s40 = sphi 0, %s42
      %s43 = sphi 0, %s40
      %s44 = sphi 0, %s43
      %s60 = sphi 0, %s44
      %s64 = sphi 0, %s64
      %s66 = sphi 0, %s64
      %s67 = sphi 0, %s66
      %s81 = sphi 0, %s67
      %s85 = sphi 0, %s85
      %s87 = sphi 0, %s85
      %s88 = sphi 0, %s87
      %s102 = sphi 0, %s88
      %s108 = sphi 0, %s110
      %s111 = sphi 0, %s108
      %s112 = sphi 0, %s111
      %s128 = sphi 0, %s112
      %s136 = sphi 0, %s138
      %s139 = sphi 0, %s136
      %s140 = sphi 0, %s139
      %s156 = sphi 0, %s140
    $region4: #{gpt2_forward.5} parent=1 // loop_header_branch
      %21 = sbr.rel (%p19) target = $region8
    $region5: #{gpt2_forward.5} parent=1 // loop_body
      %s23 = ssub.s32 %s18, 1
      %s24 = ssub.s32 %s18, 2
      %s31 = sadd.s32 1, %s26
      %p32 = scmp.ge.s32.totalorder %s31, 1
      %s33 = scalar_select %p32, 0, %s31
      %s34 = sadd.s32 1, %s25
      %s35 = scalar_select %p32, %s34, %s25
      %p36 = scmp.ge.s32.totalorder %s35, 2
      %s37 = scalar_select %p36, 0, %s35
      %s38 = ssub.s32 %s25, %s37
      %p39 = scmp.eq.s32.totalorder %s38, 0
      %s41 = sadd.s32 %s40, 1
      %s42 = scalar_select %p39, %s40, %s41
      %p45 = pneg %p39
      %p46 = scmp.eq.s32.totalorder %s18, 1
      %p47 = por %p45, %p46
      %p48 = scmp.ne.s32.totalorder %s40, %s43
      %p49 = scmp.eq.s32.totalorder %s18, 0
      %p50 = por %p48, %p49
      %p51 = scmp.ne.s32.totalorder %s40, %s43
      %p52 = scmp.eq.s32.totalorder %s23, 1
      %p53 = por %p51, %p52
      %p54 = scmp.ne.s32.totalorder %s43, %s44
      %p55 = scmp.eq.s32.totalorder %s23, 0
      %p56 = por %p54, %p55
      %p57 = scmp.ne.s32.totalorder %s43, %s44
      %p58 = scmp.eq.s32.totalorder %s24, 1
      %p59 = por %p57, %p58
      %p61 = scmp.ne.s32.totalorder %s44, %s60
      %p62 = scmp.eq.s32.totalorder %s24, 0
      %p63 = por %p61, %p62
      %s65 = sadd.s32 %s64, 1
      %p68 = scmp.eq.s32.totalorder %s18, 1
      %p69 = scmp.ne.s32.totalorder %s64, %s66
      %p70 = scmp.eq.s32.totalorder %s18, 0
      %p71 = por %p69, %p70
      %p72 = scmp.ne.s32.totalorder %s64, %s66
      %p73 = scmp.eq.s32.totalorder %s23, 1
      %p74 = por %p72, %p73
      %p75 = scmp.ne.s32.totalorder %s66, %s67
      %p76 = scmp.eq.s32.totalorder %s23, 0
      %p77 = por %p75, %p76
      %p78 = scmp.ne.s32.totalorder %s66, %s67
      %p79 = scmp.eq.s32.totalorder %s24, 1
      %p80 = por %p78, %p79
      %p82 = scmp.ne.s32.totalorder %s67, %s81
      %p83 = scmp.eq.s32.totalorder %s24, 0
      %p84 = por %p82, %p83
      %s86 = sadd.s32 %s85, 1
      %p89 = scmp.eq.s32.totalorder %s18, 1
      %p90 = scmp.ne.s32.totalorder %s85, %s87
      %p91 = scmp.eq.s32.totalorder %s18, 0
      %p92 = por %p90, %p91
      %p93 = scmp.ne.s32.totalorder %s85, %s87
      %p94 = scmp.eq.s32.totalorder %s23, 1
      %p95 = por %p93, %p94
      %p96 = scmp.ne.s32.totalorder %s87, %s88
      %p97 = scmp.eq.s32.totalorder %s23, 0
      %p98 = por %p96, %p97
      %p99 = scmp.ne.s32.totalorder %s87, %s88
      %p100 = scmp.eq.s32.totalorder %s24, 1
      %p101 = por %p99, %p100
      %p103 = scmp.ne.s32.totalorder %s88, %s102
      %p104 = scmp.eq.s32.totalorder %s24, 0
      %p105 = por %p103, %p104
      %s106 = ssub.s32 %s26, %s33
      %p107 = scmp.eq.s32.totalorder %s106, 0
      %s109 = sadd.s32 %s108, 1
      %s110 = scalar_select %p107, %s108, %s109
      %p113 = pneg %p107
      %p114 = scmp.eq.s32.totalorder %s18, 1
      %p115 = por %p113, %p114
      %p116 = scmp.ne.s32.totalorder %s108, %s111
      %p117 = scmp.eq.s32.totalorder %s18, 0
      %p118 = por %p116, %p117
      %p119 = scmp.ne.s32.totalorder %s108, %s111
      %p120 = scmp.eq.s32.totalorder %s23, 1
      %p121 = por %p119, %p120
      %p122 = scmp.ne.s32.totalorder %s111, %s112
      %p123 = scmp.eq.s32.totalorder %s23, 0
      %p124 = por %p122, %p123
      %p125 = scmp.ne.s32.totalorder %s111, %s112
      %p126 = scmp.eq.s32.totalorder %s24, 1
      %p127 = por %p125, %p126
      %p129 = scmp.ne.s32.totalorder %s112, %s128
      %p130 = scmp.eq.s32.totalorder %s24, 0
      %p131 = por %p129, %p130
      %s132 = ssub.s32 %s25, %s37
      %s133 = ssub.s32 %s26, %s33
      %s134 = sor.u32 %s132, %s133
      %p135 = scmp.eq.s32.totalorder %s134, 0
      %s137 = sadd.s32 %s136, 1
      %s138 = scalar_select %p135, %s136, %s137
      %p141 = pneg %p135
      %p142 = scmp.eq.s32.totalorder %s18, 1
      %p143 = por %p141, %p142
      %p144 = scmp.ne.s32.totalorder %s136, %s139
      %p145 = scmp.eq.s32.totalorder %s18, 0
      %p146 = por %p144, %p145
      %p147 = scmp.ne.s32.totalorder %s136, %s139
      %p148 = scmp.eq.s32.totalorder %s23, 1
      %p149 = por %p147, %p148
      %p150 = scmp.ne.s32.totalorder %s139, %s140
      %p151 = scmp.eq.s32.totalorder %s23, 0
      %p152 = por %p150, %p151
      %p153 = scmp.ne.s32.totalorder %s139, %s140
      %p154 = scmp.eq.s32.totalorder %s24, 1
      %p155 = por %p153, %p154
      %p157 = scmp.ne.s32.totalorder %s140, %s156
      %p158 = scmp.eq.s32.totalorder %s24, 0
      %p159 = por %p157, %p158
      %p160 = scmp.le.s32.totalorder 1, %s18
      %p161 = scmp.lt.s32.totalorder %s18, 3
      %p162 = pnand %p160, %p161
      %p163 = pneg %p162
      // Predicated region
      $region9: #{gpt2_forward.5} parent=5 // pred_check
        _
      $region10: #{gpt2_forward.5} parent=5 // pred_check_branch
        %165 = sbr.rel (%p162) target = $region12
      $region11: #{gpt2_forward.5} parent=5 // pred_region
        %s166 = ssub.s32 %s18, 1
        // Predicated region
        $region13: #{gpt2_forward.5} parent=11 // pred_check
          %p167 = pneg %p77
        $region14: #{gpt2_forward.5} parent=11 // pred_check_branch
          %169 = sbr.rel (%p167) target = $region16
        $region15: #{gpt2_forward.5} parent=11 // pred_region
          %s171 = ssub.s32 16, 16
          %172 = vsyncadd [#allocation7], %s171
          %s174 = sshll.u32 [#allocation6], 4
          %s175 = int_to_ptr.vmem [resolvable:$true] %s174
          %177 = dma.hbm_to_vmem [thread:$0]  %s1, 16, %s175, [#allocation7]
        $region16: #{gpt2_forward.5} parent=11 // pred_fallthru
          _
        // Predicated region
        $region17: #{gpt2_forward.5} parent=11 // pred_check
          %p178 = pneg %p98
        $region18: #{gpt2_forward.5} parent=11 // pred_check_branch
          %180 = sbr.rel (%p178) target = $region20
        $region19: #{gpt2_forward.5} parent=11 // pred_region
          %s182 = ssub.s32 16, 16
          %183 = vsyncadd [#allocation7], %s182
          %s185 = sshll.u32 [#allocation8], 4
          %s186 = int_to_ptr.vmem [resolvable:$true] %s185
          %188 = dma.hbm_to_vmem [thread:$0]  %s2, 16, %s186, [#allocation7]
        $region20: #{gpt2_forward.5} parent=11 // pred_fallthru
          _
        // Predicated region
        $region21: #{gpt2_forward.5} parent=11 // pred_check
          %p189 = pneg %p124
        $region22: #{gpt2_forward.5} parent=11 // pred_check_branch
          %191 = sbr.rel (%p189) target = $region24
        $region23: #{gpt2_forward.5} parent=11 // pred_region
          %s193 = ssub.s32 256, 256
          %194 = vsyncadd [#allocation10], %s193
          %s195 = smul.addr %s28, 64
          %s196 = scalar_lea.hbm %s3, %s195
          %s197 = sshll.u32 [#allocation9], 4
          %s198 = int_to_ptr.vmem [resolvable:$true] %s197
          %203 = dma.hbm_to_vmem [thread:$0]  %s196, 256, %s198, [#allocation10], 64, 64, 4
        $region24: #{gpt2_forward.5} parent=11 // pred_fallthru
          _
      $region12: #{gpt2_forward.5} parent=5 // pred_fallthru
        _
      %p204 = scmp.lt.s32.totalorder %s18, 2
      // Predicated region
      $region25: #{gpt2_forward.5} parent=5 // pred_check
        %p205 = pneg %p204
      $region26: #{gpt2_forward.5} parent=5 // pred_check_branch
        %207 = sbr.rel (%p205) target = $region28
      $region27: #{gpt2_forward.5} parent=5 // pred_region
        // Predicated region
        $region29: #{gpt2_forward.5} parent=27 // pred_check
          %p208 = pneg %p50
        $region30: #{gpt2_forward.5} parent=27 // pred_check_branch
          %210 = sbr.rel (%p208) target = $region32
        $region31: #{gpt2_forward.5} parent=27 // pred_region
          %s211 = sand.u32 %s40, 1
          %s212 = scalar_lea.sflag [#allocation4], %s211
          %s213 = sand.u32 %s40, 1
          %s214 = smul.addr %s213, 8
          %s215 = scalar_lea.vmem [#allocation3], %s214
          %s217 = ssub.s32 128, 128
          %218 = vsyncadd %s212, %s217
          %s219 = smul.addr %s25, 128
          %s220 = scalar_lea.hbm %s0, %s219
          %s222 = sshll.u32 %s215, 4
          %s223 = int_to_ptr.vmem [resolvable:$true] %s222
          %225 = dma.hbm_to_vmem [thread:$0]  %s220, 128, %s223, %s212
        $region32: #{gpt2_forward.5} parent=27 // pred_fallthru
          _
      $region28: #{gpt2_forward.5} parent=5 // pred_fallthru
        _
      %p226 = scmp.le.s32.totalorder 1, %s18
      %p227 = scmp.lt.s32.totalorder %s18, 3
      %p228 = pnand %p226, %p227
      %p229 = pneg %p228
      // Predicated region
      $region33: #{gpt2_forward.5} parent=5 // pred_check
        _
      $region34: #{gpt2_forward.5} parent=5 // pred_check_branch
        %231 = sbr.rel (%p228) target = $region36
      $region35: #{gpt2_forward.5} parent=5 // pred_region
        %s232 = ssub.s32 %s18, 1
        %s233 = sand.u32 %s43, 1
        %s234 = scalar_lea.sflag [#allocation4], %s233
        %s235 = sand.u32 %s43, 1
        %s236 = smul.addr %s235, 8
        %s237 = scalar_lea.vmem [#allocation3], %s236
        // Predicated region
        $region37: #{gpt2_forward.5} parent=35 // pred_check
          %p238 = pneg %p56
        $region38: #{gpt2_forward.5} parent=35 // pred_check_branch
          %240 = sbr.rel (%p238) target = $region40
        $region39: #{gpt2_forward.5} parent=35 // pred_region
          %241 = dma.done %s234, 128
        $region40: #{gpt2_forward.5} parent=35 // pred_fallthru
          _
        // Predicated region
        $region41: #{gpt2_forward.5} parent=35 // pred_check
          %p242 = pneg %p77
        $region42: #{gpt2_forward.5} parent=35 // pred_check_branch
          %244 = sbr.rel (%p242) target = $region44
        $region43: #{gpt2_forward.5} parent=35 // pred_region
          %245 = dma.done [#allocation7], 16
        $region44: #{gpt2_forward.5} parent=35 // pred_fallthru
          _
        // Predicated region
        $region45: #{gpt2_forward.5} parent=35 // pred_check
          %p246 = pneg %p98
        $region46: #{gpt2_forward.5} parent=35 // pred_check_branch
          %248 = sbr.rel (%p246) target = $region48
        $region47: #{gpt2_forward.5} parent=35 // pred_region
          %249 = dma.done [#allocation7], 16
        $region48: #{gpt2_forward.5} parent=35 // pred_fallthru
          _
        // Predicated region
        $region49: #{gpt2_forward.5} parent=35 // pred_check
          %p250 = pneg %p124
        $region50: #{gpt2_forward.5} parent=35 // pred_check_branch
          %252 = sbr.rel (%p250) target = $region52
        $region51: #{gpt2_forward.5} parent=35 // pred_region
          %253 = dma.done [#allocation10], 256
        $region52: #{gpt2_forward.5} parent=35 // pred_fallthru
          _
        %s254 = sand.u32 %s43, 1
        %s255 = scalar_lea.sflag [#allocation4], %s254
        %s256 = sand.u32 %s43, 1
        %s257 = smul.addr %s256, 8
        %s258 = scalar_lea.vmem [#allocation3], %s257
        %p259 = pneg %p56
        %p260 = pneg %p53
        %p261 = pneg %p77
        %p262 = pneg %p74
        %p263 = pneg %p98
        %p264 = pneg %p95
        %p265 = pneg %p124
        %p266 = pneg %p121
        %p267 = pneg %p152
        %p268 = pneg %p149
        %s269 = sand.u32 %s139, 1
        %s270 = scalar_lea.sflag [#allocation5], %s269
        %s271 = sand.u32 %s139, 1
        %s272 = smul.addr %s271, 8
        %s273 = scalar_lea.vmem [#allocation11], %s272
        %p275 = scmp.eq.s32.totalorder %s28, 0
        // Predicated region
        $region53: #{gpt2_forward.5} parent=35 // pred_check
          %p276 = pneg %p275
        $region54: #{gpt2_forward.5} parent=35 // pred_check_branch
          %278 = sbr.rel (%p276) target = $region56
        $region55: #{gpt2_forward.5} parent=35 // pred_region
          %v279 = vld [vmem:[%s237] sm:$0xff]
          %v280 = vld [vmem:[#allocation6] sm:$0x1]
          %v281 = vld [vmem:[#allocation8] sm:$0x1]
          %vm282 = vcmask 261120
          %v283 = vsel %vm282, %v279, 0.0
          %284 = vadd.xlane.f32.xlu0 %v283
          %v285 = vpop.xlane.xlu0 %284
          %v286 = vrcp.pop 32.0
          %v287 = vmul.f32 %v285, %v286
          %v288 = vsub.f32 %v279, %v287
          %v289 = vmul.f32 %v288, %v288
          %v290 = vsel %vm282, %v289, 0.0
          %291 = vadd.xlane.f32.xlu0 %v290
          %v292 = vpop.xlane.xlu0 %291
          %v293 = vmul.f32 %v292, %v286
          %v294 = vadd.f32 %v293, 1e-05
          %v295 = vrsqrt.pop %v294
          %v296 = vmul.f32 %v288, %v295
          %v298 = vlaneseq
          %v299 = vshrl.u32 %v298, 7
          %v300 = vsub.s32 0, %v299
          %v301 = vrot.slane %v280, %v300
          %v303 = vmul.f32 %v296, %v301
          %v305 = vlaneseq
          %v306 = vshrl.u32 %v305, 7
          %v307 = vsub.s32 0, %v306
          %v308 = vrot.slane %v281, %v307
          %v310 = vadd.f32 %v303, %v308
          %v311 = vpack.c.bf16 %v310, %v310
          %vm312 = vcmask 257024
          %313 = vst.msk [vmem:[#allocation2] sm:$0xf] %vm312, %v311
        $region56: #{gpt2_forward.5} parent=35 // pred_fallthru
          _
        %v314 = vld [vmem:[#allocation2] sm:$0xf]
        %v315 = vld [vmem:[#allocation9] sm:$0xf]
        %v316 = vld [vmem:[#allocation9 + $0x4] sm:$0xf]
        %v317 = vld [vmem:[#allocation9 + $0x8] sm:$0xf]
        %v318 = vld [vmem:[#allocation9 + $0xc] sm:$0xf]
        %v323 = vunpack.c.l.b16 %v315
        %v324 = vunpack.c.l.b16 %v316
        %v325 = vunpack.c.l.b16 %v317
        %v326 = vunpack.c.l.b16 %v318
        %v327 = vpack.c.b16 %v324, %v323
        %v328 = vpack.c.b16 %v326, %v325
        %vm331 = vcmask 261120
        %v333 = vsel %vm331, %v314, 0
        %335 = vmatprep.subr.bf16.mxu0 0
        %336 = vmatpush1.bf16.msra.mxu0 %v327
        %337 = vmatprep.subr.bf16.mxu0 0
        %338 = vmatpush1.bf16.msra.mxu0 %v328
        %339 = vmatprep.subr.bf16.mxu0 0
        %340 = vmatpush1.bf16.msra.mxu0 0
        %341 = vmatprep.subr.bf16.mxu0 0
        %342 = vmatpush1.bf16.msra.mxu0 0
        %343 = vmatprep.subr.bf16.mxu0 0
        %344 = vmatpush1.bf16.msra.mxu0 0
        %345 = vmatprep.subr.bf16.mxu0 0
        %346 = vmatpush1.bf16.msra.mxu0 0
        %347 = vmatprep.subr.bf16.mxu0 0
        %348 = vmatpush1.bf16.msra.mxu0 0
        %349 = vmatprep.subr.bf16.mxu0 0
        %350 = vmatpush1.bf16.msra.mxu0 0
        %351 = vmatprep.subr.bf16.mxu0 0
        %352 = vmatpush1.bf16.msra.mxu0 0
        %353 = vmatprep.subr.bf16.mxu0 0
        %354 = vmatpush1.bf16.msra.mxu0 0
        %355 = vmatprep.subr.bf16.mxu0 0
        %356 = vmatpush1.bf16.msra.mxu0 0
        %357 = vmatprep.subr.bf16.mxu0 0
        %358 = vmatpush1.bf16.msra.mxu0 0
        %359 = vmatprep.subr.bf16.mxu0 0
        %360 = vmatpush1.bf16.msra.mxu0 0
        %361 = vmatprep.subr.bf16.mxu0 0
        %362 = vmatpush1.bf16.msra.mxu0 0
        %363 = vmatprep.subr.bf16.mxu0 0
        %364 = vmatpush1.bf16.msra.mxu0 0
        %365 = vmatprep.subr.bf16.mxu0 0
        %366 = vmatpush1.bf16.msra.mxu0 0
        %367 = vmatprep.mubr.bf16.mxu0 0
        %368 = vmatmul.mubr.bf16.gmra.mrb[0].mxu0 %v333
        %v369 = vpop.f32.mrb[0].mxu0
        %v370 = vadd.f32 0.0, %v369
        %v371 = vpop.f32.mrb[0].mxu0
        %v372 = vpop.f32.mrb[0].mxu0
        %v373 = vpop.f32.mrb[0].mxu0
        %374 = vdwg.mxu0
        %vm375 = vcmask 523264
        %376 = vst.msk [vmem:[%s273] sm:$0xff] %vm375, %v370
        %s377 = sand.u32 %s139, 1
        %s378 = scalar_lea.sflag [#allocation5], %s377
        %s379 = sand.u32 %s139, 1
        %s380 = smul.addr %s379, 8
        %s381 = scalar_lea.vmem [#allocation11], %s380
        // Predicated region
        $region57: #{gpt2_forward.5} parent=35 // pred_check
          %p382 = pneg %p149
        $region58: #{gpt2_forward.5} parent=35 // pred_check_branch
          %384 = sbr.rel (%p382) target = $region60
        $region59: #{gpt2_forward.5} parent=35 // pred_region
          %s386 = ssub.s32 128, 128
          %387 = vsyncadd %s378, %s386
          %s388 = sadd.s32 %s28, %s27
          %s389 = smul.addr %s388, 128
          %s390 = scalar_lea.hbm %s4, %s389
          %s392 = sshll.u32 %s381, 4
          %s393 = int_to_ptr.vmem [resolvable:$true] %s392
          %395 = dma.vmem_to_hbm [thread:$0]  %s393, 128, %s390, %s378
        $region60: #{gpt2_forward.5} parent=35 // pred_fallthru
          _
      $region36: #{gpt2_forward.5} parent=5 // pred_fallthru
        _
      %p396 = scmp.le.s32.totalorder 2, %s18
      // Predicated region
      $region61: #{gpt2_forward.5} parent=5 // pred_check
        %p397 = pneg %p396
      $region62: #{gpt2_forward.5} parent=5 // pred_check_branch
        %399 = sbr.rel (%p397) target = $region64
      $region63: #{gpt2_forward.5} parent=5 // pred_region
        %s400 = ssub.s32 %s18, 2
        // Predicated region
        $region65: #{gpt2_forward.5} parent=63 // pred_check
          %p401 = pneg %p155
        $region66: #{gpt2_forward.5} parent=63 // pred_check_branch
          %403 = sbr.rel (%p401) target = $region68
        $region67: #{gpt2_forward.5} parent=63 // pred_region
          %s404 = sand.u32 %s140, 1
          %s405 = scalar_lea.sflag [#allocation5], %s404
          %s406 = sand.u32 %s140, 1
          %s407 = smul.addr %s406, 8
          %s408 = scalar_lea.vmem [#allocation11], %s407
          %409 = dma.done %s405, 128
        $region68: #{gpt2_forward.5} parent=63 // pred_fallthru
          _
      $region64: #{gpt2_forward.5} parent=5 // pred_fallthru
        _
    $region6: #{gpt2_forward.5} parent=1 // loop_footer
      %s22 = sadd.s32 1, %s18
    $region7: #{gpt2_forward.5} parent=1 // loop_footer_branch
      %17 = sbr.rel target = $region3
    $region8: #{gpt2_forward.5} parent=1 // loop_exit
      _
    %410 = vsyncpa [#allocation4], 1
    %s411 = scalar_lea.sflag [#allocation4], 1
    %412 = vsyncpa %s411, 1
    %413 = vsyncpa [#allocation7], 1
    %414 = vsyncpa [#allocation10], 1
    %415 = vsyncpa [#allocation5], 1
    %s416 = scalar_lea.sflag [#allocation5], 1
    %417 = vsyncpa %s416, 1

// kernel: gpt2_forward.3
$region0: #{gpt2_forward.3}
  #allocation0 [shape = 'u32[]', space=smem, size = 0x4, offset = 0x4, fixed_abs, tag = 'smem constant byte address 0x4 - core index']
  #allocation1 [shape = 'u32[144,128]{1,0:T(1,128)}', space=vmem, size = 0x12000, scoped, tag = 'internal scratch']
  #allocation2 [shape = 'f32[8,32]{1,0:T(8,128)}', space=vmem, size = 0x1000, scoped, tag = 'scratch operand']
  #allocation3 [shape = 'bf16[8,32]{1,0:T(8,128)(2,1)}', space=vmem, size = 0x800, scoped, tag = 'scratch operand']
  %s0 = inlined_call_operand.hbm [shape: f32[2,8,32], index: 0, kind: input, shape index: {}, may-alias: {0,13}]
  %s1 = inlined_call_operand.hbm [shape: f32[1,32], index: 1, kind: input, shape index: {}]
  %s2 = inlined_call_operand.hbm [shape: f32[1,32], index: 2, kind: input, shape index: {}]
  %s3 = inlined_call_operand.hbm [shape: bf16[4,32,24], index: 3, kind: input, shape index: {}]
  %s4 = inlined_call_operand.hbm [shape: f32[4,1,24], index: 4, kind: input, shape index: {}]
  %s5 = inlined_call_operand.hbm [shape: bf16[4,8,32], index: 5, kind: input, shape index: {}]
  %s6 = inlined_call_operand.hbm [shape: f32[1,32], index: 6, kind: input, shape index: {}]
  %s7 = inlined_call_operand.hbm [shape: f32[1,32], index: 7, kind: input, shape index: {}]
  %s8 = inlined_call_operand.hbm [shape: f32[1,32], index: 8, kind: input, shape index: {}]
  %s9 = inlined_call_operand.hbm [shape: bf16[32,64], index: 9, kind: input, shape index: {}]
  %s10 = inlined_call_operand.hbm [shape: f32[1,64], index: 10, kind: input, shape index: {}]
  %s11 = inlined_call_operand.hbm [shape: bf16[64,32], index: 11, kind: input, shape index: {}]
  %s12 = inlined_call_operand.hbm [shape: f32[1,32], index: 12, kind: input, shape index: {}]
  %s13 = inlined_call_operand.hbm [shape: f32[2,8,32], index: 13, kind: output, shape index: {}, may-alias: {0,13}]
  %s14 = sld [smem:[#allocation0]]
  $region145: #{gpt2_forward.3} parent=0
    _
  %s16 = ssub.s32 1, %s14
  %s17 = scalar_select 0, %s16, %s14
  $region1: #{gpt2_forward.3} parent=0
    #allocation4 [shape = 'u8[8192]{0}', space=vmem, size = 0x2000, scoped, tag = 'input window, operand 0']
    #allocation5 [shape = 's32[2]{0}', space=sflag, size = 0x8, scoped, tag = 'scoped memory for gpt2_forward.3']
    #allocation6 [shape = 's32[2]{0}', space=sflag, size = 0x8, scoped, tag = 'scoped memory for gpt2_forward.3']
    #allocation7 [shape = 'u8[512]{0}', space=vmem, size = 0x400, scoped, tag = 'input window, operand 1, single buffered']
    #allocation8 [shape = 's32[1]{0}', space=sflag, size = 0x4, scoped, tag = 'scoped memory for gpt2_forward.3']
    #allocation9 [shape = 'u8[512]{0}', space=vmem, size = 0x400, scoped, tag = 'input window, operand 2, single buffered']
    #allocation10 [shape = 'u8[16384]{0}', space=vmem, size = 0x4000, scoped, tag = 'input window, operand 3']
    #allocation11 [shape = 's32[2]{0}', space=sflag, size = 0x8, scoped, tag = 'scoped memory for gpt2_forward.3']
    #allocation12 [shape = 'u8[1024]{0}', space=vmem, size = 0x400, scoped, tag = 'input window, operand 4']
    #allocation13 [shape = 'u8[4096]{0}', space=vmem, size = 0x1000, scoped, tag = 'input window, operand 5']
    #allocation14 [shape = 's32[2]{0}', space=sflag, size = 0x8, scoped, tag = 'scoped memory for gpt2_forward.3']
    #allocation15 [shape = 'u8[512]{0}', space=vmem, size = 0x400, scoped, tag = 'input window, operand 6, single buffered']
    #allocation16 [shape = 'u8[512]{0}', space=vmem, size = 0x400, scoped, tag = 'input window, operand 7, single buffered']
    #allocation17 [shape = 's32[1]{0}', space=sflag, size = 0x4, scoped, tag = 'scoped memory for gpt2_forward.3']
    #allocation18 [shape = 'u8[512]{0}', space=vmem, size = 0x400, scoped, tag = 'input window, operand 8, single buffered']
    #allocation19 [shape = 'u8[8192]{0}', space=vmem, size = 0x2000, scoped, tag = 'input window, operand 9, single buffered']
    #allocation20 [shape = 's32[1]{0}', space=sflag, size = 0x4, scoped, tag = 'scoped memory for gpt2_forward.3']
    #allocation21 [shape = 'u8[512]{0}', space=vmem, size = 0x400, scoped, tag = 'input window, operand 10, single buffered']
    #allocation22 [shape = 'u8[16384]{0}', space=vmem, size = 0x4000, scoped, tag = 'input window, operand 11, single buffered']
    #allocation23 [shape = 's32[1]{0}', space=sflag, size = 0x4, scoped, tag = 'scoped memory for gpt2_forward.3']
    #allocation24 [shape = 'u8[512]{0}', space=vmem, size = 0x400, scoped, tag = 'input window, operand 12, single buffered']
    #allocation25 [shape = 'u8[8192]{0}', space=vmem, size = 0x2000, scoped, tag = 'output window, operand 0']
    %18 = vsyncpa [#allocation5], 0
    %s19 = scalar_lea.sflag [#allocation5], 1
    %20 = vsyncpa %s19, 0
    %21 = vsyncpa [#allocation8], 0
    %22 = vsyncpa [#allocation11], 0
    %s23 = scalar_lea.sflag [#allocation11], 1
    %24 = vsyncpa %s23, 0
    %25 = vsyncpa [#allocation14], 0
    %s26 = scalar_lea.sflag [#allocation14], 1
    %27 = vsyncpa %s26, 0
    %28 = vsyncpa [#allocation17], 0
    %29 = vsyncpa [#allocation20], 0
    %30 = vsyncpa [#allocation23], 0
    %31 = vsyncpa [#allocation6], 0
    %s32 = scalar_lea.sflag [#allocation6], 1
    %33 = vsyncpa %s32, 0
    loop: start=0, step=1, limit=10
    $region2: #{gpt2_forward.3} parent=1 // loop_pre_header
      _
    $region3: #{gpt2_forward.3} parent=1 // loop_header
      %s35 = sphi 0, %s39
      %p36 = scmp.ge.s32.totalorder %s35, 10
      %s42 = sphi 0, %s54
      %s43 = sphi 0, %s50
      %s44 = sphi 0, %s42
      %s45 = sphi 0, %s43
      %s46 = sphi 0, %s44
      %s47 = sphi 0, %s45
      %s57 = sphi 0, %s59
      %s60 = sphi 0, %s57
      %s61 = sphi 0, %s60
      %s77 = sphi 0, %s61
      %s81 = sphi 0, %s81
      %s83 = sphi 0, %s81
      %s84 = sphi 0, %s83
      %s98 = sphi 0, %s84
      %s102 = sphi 0, %s102
      %s104 = sphi 0, %s102
      %s105 = sphi 0, %s104
      %s119 = sphi 0, %s105
      %s125 = sphi 0, %s127
      %s128 = sphi 0, %s125
      %s129 = sphi 0, %s128
      %s145 = sphi 0, %s129
      %s151 = sphi 0, %s153
      %s154 = sphi 0, %s151
      %s155 = sphi 0, %s154
      %s171 = sphi 0, %s155
      %s177 = sphi 0, %s179
      %s180 = sphi 0, %s177
      %s181 = sphi 0, %s180
      %s197 = sphi 0, %s181
      %s201 = sphi 0, %s201
      %s203 = sphi 0, %s201
      %s204 = sphi 0, %s203
      %s218 = sphi 0, %s204
      %s222 = sphi 0, %s222
      %s224 = sphi 0, %s222
      %s225 = sphi 0, %s224
      %s239 = sphi 0, %s225
      %s243 = sphi 0, %s243
      %s245 = sphi 0, %s243
      %s246 = sphi 0, %s245
      %s260 = sphi 0, %s246
      %s264 = sphi 0, %s264
      %s266 = sphi 0, %s264
      %s267 = sphi 0, %s266
      %s281 = sphi 0, %s267
      %s285 = sphi 0, %s285
      %s287 = sphi 0, %s285
      %s288 = sphi 0, %s287
      %s302 = sphi 0, %s288
      %s306 = sphi 0, %s306
      %s308 = sphi 0, %s306
      %s309 = sphi 0, %s308
      %s323 = sphi 0, %s309
      %s327 = sphi 0, %s327
      %s329 = sphi 0, %s327
      %s330 = sphi 0, %s329
      %s344 = sphi 0, %s330
      %s350 = sphi 0, %s352
      %s353 = sphi 0, %s350
      %s354 = sphi 0, %s353
      %s370 = sphi 0, %s354
    $region4: #{gpt2_forward.3} parent=1 // loop_header_branch
      %38 = sbr.rel (%p36) target = $region8
    $region5: #{gpt2_forward.3} parent=1 // loop_body
      %s40 = ssub.s32 %s35, 1
      %s41 = ssub.s32 %s35, 2
      %s48 = sadd.s32 1, %s43
      %p49 = scmp.ge.s32.totalorder %s48, 4
      %s50 = scalar_select %p49, 0, %s48
      %s51 = sadd.s32 1, %s42
      %s52 = scalar_select %p49, %s51, %s42
      %p53 = scmp.ge.s32.totalorder %s52, 2
      %s54 = scalar_select %p53, 0, %s52
      %s55 = ssub.s32 %s42, %s54
      %p56 = scmp.eq.s32.totalorder %s55, 0
      %s58 = sadd.s32 %s57, 1
      %s59 = scalar_select %p56, %s57, %s58
      %p62 = pneg %p56
      %p63 = scmp.eq.s32.totalorder %s35, 7
      %p64 = por %p62, %p63
      %p65 = scmp.ne.s32.totalorder %s57, %s60
      %p66 = scmp.eq.s32.totalorder %s35, 0
      %p67 = por %p65, %p66
      %p68 = scmp.ne.s32.totalorder %s57, %s60
      %p69 = scmp.eq.s32.totalorder %s40, 7
      %p70 = por %p68, %p69
      %p71 = scmp.ne.s32.totalorder %s60, %s61
      %p72 = scmp.eq.s32.totalorder %s40, 0
      %p73 = por %p71, %p72
      %p74 = scmp.ne.s32.totalorder %s60, %s61
      %p75 = scmp.eq.s32.totalorder %s41, 7
      %p76 = por %p74, %p75
      %p78 = scmp.ne.s32.totalorder %s61, %s77
      %p79 = scmp.eq.s32.totalorder %s41, 0
      %p80 = por %p78, %p79
      %s82 = sadd.s32 %s81, 1
      %p85 = scmp.eq.s32.totalorder %s35, 7
      %p86 = scmp.ne.s32.totalorder %s81, %s83
      %p87 = scmp.eq.s32.totalorder %s35, 0
      %p88 = por %p86, %p87
      %p89 = scmp.ne.s32.totalorder %s81, %s83
      %p90 = scmp.eq.s32.totalorder %s40, 7
      %p91 = por %p89, %p90
      %p92 = scmp.ne.s32.totalorder %s83, %s84
      %p93 = scmp.eq.s32.totalorder %s40, 0
      %p94 = por %p92, %p93
      %p95 = scmp.ne.s32.totalorder %s83, %s84
      %p96 = scmp.eq.s32.totalorder %s41, 7
      %p97 = por %p95, %p96
      %p99 = scmp.ne.s32.totalorder %s84, %s98
      %p100 = scmp.eq.s32.totalorder %s41, 0
      %p101 = por %p99, %p100
      %s103 = sadd.s32 %s102, 1
      %p106 = scmp.eq.s32.totalorder %s35, 7
      %p107 = scmp.ne.s32.totalorder %s102, %s104
      %p108 = scmp.eq.s32.totalorder %s35, 0
      %p109 = por %p107, %p108
      %p110 = scmp.ne.s32.totalorder %s102, %s104
      %p111 = scmp.eq.s32.totalorder %s40, 7
      %p112 = por %p110, %p111
      %p113 = scmp.ne.s32.totalorder %s104, %s105
      %p114 = scmp.eq.s32.totalorder %s40, 0
      %p115 = por %p113, %p114
      %p116 = scmp.ne.s32.totalorder %s104, %s105
      %p117 = scmp.eq.s32.totalorder %s41, 7
      %p118 = por %p116, %p117
      %p120 = scmp.ne.s32.totalorder %s105, %s119
      %p121 = scmp.eq.s32.totalorder %s41, 0
      %p122 = por %p120, %p121
      %s123 = ssub.s32 %s43, %s50
      %p124 = scmp.eq.s32.totalorder %s123, 0
      %s126 = sadd.s32 %s125, 1
      %s127 = scalar_select %p124, %s125, %s126
      %p130 = pneg %p124
      %p131 = scmp.eq.s32.totalorder %s35, 7
      %p132 = por %p130, %p131
      %p133 = scmp.ne.s32.totalorder %s125, %s128
      %p134 = scmp.eq.s32.totalorder %s35, 0
      %p135 = por %p133, %p134
      %p136 = scmp.ne.s32.totalorder %s125, %s128
      %p137 = scmp.eq.s32.totalorder %s40, 7
      %p138 = por %p136, %p137
      %p139 = scmp.ne.s32.totalorder %s128, %s129
      %p140 = scmp.eq.s32.totalorder %s40, 0
      %p141 = por %p139, %p140
      %p142 = scmp.ne.s32.totalorder %s128, %s129
      %p143 = scmp.eq.s32.totalorder %s41, 7
      %p144 = por %p142, %p143
      %p146 = scmp.ne.s32.totalorder %s129, %s145
      %p147 = scmp.eq.s32.totalorder %s41, 0
      %p148 = por %p146, %p147
      %s149 = ssub.s32 %s43, %s50
      %p150 = scmp.eq.s32.totalorder %s149, 0
      %s152 = sadd.s32 %s151, 1
      %s153 = scalar_select %p150, %s151, %s152
      %p156 = pneg %p150
      %p157 = scmp.eq.s32.totalorder %s35, 7
      %p158 = por %p156, %p157
      %p159 = scmp.ne.s32.totalorder %s151, %s154
      %p160 = scmp.eq.s32.totalorder %s35, 0
      %p161 = por %p159, %p160
      %p162 = scmp.ne.s32.totalorder %s151, %s154
      %p163 = scmp.eq.s32.totalorder %s40, 7
      %p164 = por %p162, %p163
      %p165 = scmp.ne.s32.totalorder %s154, %s155
      %p166 = scmp.eq.s32.totalorder %s40, 0
      %p167 = por %p165, %p166
      %p168 = scmp.ne.s32.totalorder %s154, %s155
      %p169 = scmp.eq.s32.totalorder %s41, 7
      %p170 = por %p168, %p169
      %p172 = scmp.ne.s32.totalorder %s155, %s171
      %p173 = scmp.eq.s32.totalorder %s41, 0
      %p174 = por %p172, %p173
      %s175 = ssub.s32 %s43, %s50
      %p176 = scmp.eq.s32.totalorder %s175, 0
      %s178 = sadd.s32 %s177, 1
      %s179 = scalar_select %p176, %s177, %s178
      %p182 = pneg %p176
      %p183 = scmp.eq.s32.totalorder %s35, 7
      %p184 = por %p182, %p183
      %p185 = scmp.ne.s32.totalorder %s177, %s180
      %p186 = scmp.eq.s32.totalorder %s35, 0
      %p187 = por %p185, %p186
      %p188 = scmp.ne.s32.totalorder %s177, %s180
      %p189 = scmp.eq.s32.totalorder %s40, 7
      %p190 = por %p188, %p189
      %p191 = scmp.ne.s32.totalorder %s180, %s181
      %p192 = scmp.eq.s32.totalorder %s40, 0
      %p193 = por %p191, %p192
      %p194 = scmp.ne.s32.totalorder %s180, %s181
      %p195 = scmp.eq.s32.totalorder %s41, 7
      %p196 = por %p194, %p195
      %p198 = scmp.ne.s32.totalorder %s181, %s197
      %p199 = scmp.eq.s32.totalorder %s41, 0
      %p200 = por %p198, %p199
      %s202 = sadd.s32 %s201, 1
      %p205 = scmp.eq.s32.totalorder %s35, 7
      %p206 = scmp.ne.s32.totalorder %s201, %s203
      %p207 = scmp.eq.s32.totalorder %s35, 0
      %p208 = por %p206, %p207
      %p209 = scmp.ne.s32.totalorder %s201, %s203
      %p210 = scmp.eq.s32.totalorder %s40, 7
      %p211 = por %p209, %p210
      %p212 = scmp.ne.s32.totalorder %s203, %s204
      %p213 = scmp.eq.s32.totalorder %s40, 0
      %p214 = por %p212, %p213
      %p215 = scmp.ne.s32.totalorder %s203, %s204
      %p216 = scmp.eq.s32.totalorder %s41, 7
      %p217 = por %p215, %p216
      %p219 = scmp.ne.s32.totalorder %s204, %s218
      %p220 = scmp.eq.s32.totalorder %s41, 0
      %p221 = por %p219, %p220
      %s223 = sadd.s32 %s222, 1
      %p226 = scmp.eq.s32.totalorder %s35, 7
      %p227 = scmp.ne.s32.totalorder %s222, %s224
      %p228 = scmp.eq.s32.totalorder %s35, 0
      %p229 = por %p227, %p228
      %p230 = scmp.ne.s32.totalorder %s222, %s224
      %p231 = scmp.eq.s32.totalorder %s40, 7
      %p232 = por %p230, %p231
      %p233 = scmp.ne.s32.totalorder %s224, %s225
      %p234 = scmp.eq.s32.totalorder %s40, 0
      %p235 = por %p233, %p234
      %p236 = scmp.ne.s32.totalorder %s224, %s225
      %p237 = scmp.eq.s32.totalorder %s41, 7
      %p238 = por %p236, %p237
      %p240 = scmp.ne.s32.totalorder %s225, %s239
      %p241 = scmp.eq.s32.totalorder %s41, 0
      %p242 = por %p240, %p241
      %s244 = sadd.s32 %s243, 1
      %p247 = scmp.eq.s32.totalorder %s35, 7
      %p248 = scmp.ne.s32.totalorder %s243, %s245
      %p249 = scmp.eq.s32.totalorder %s35, 0
      %p250 = por %p248, %p249
      %p251 = scmp.ne.s32.totalorder %s243, %s245
      %p252 = scmp.eq.s32.totalorder %s40, 7
      %p253 = por %p251, %p252
      %p254 = scmp.ne.s32.totalorder %s245, %s246
      %p255 = scmp.eq.s32.totalorder %s40, 0
      %p256 = por %p254, %p255
      %p257 = scmp.ne.s32.totalorder %s245, %s246
      %p258 = scmp.eq.s32.totalorder %s41, 7
      %p259 = por %p257, %p258
      %p261 = scmp.ne.s32.totalorder %s246, %s260
      %p262 = scmp.eq.s32.totalorder %s41, 0
      %p263 = por %p261, %p262
      %s265 = sadd.s32 %s264, 1
      %p268 = scmp.eq.s32.totalorder %s35, 7
      %p269 = scmp.ne.s32.totalorder %s264, %s266
      %p270 = scmp.eq.s32.totalorder %s35, 0
      %p271 = por %p269, %p270
      %p272 = scmp.ne.s32.totalorder %s264, %s266
      %p273 = scmp.eq.s32.totalorder %s40, 7
      %p274 = por %p272, %p273
      %p275 = scmp.ne.s32.totalorder %s266, %s267
      %p276 = scmp.eq.s32.totalorder %s40, 0
      %p277 = por %p275, %p276
      %p278 = scmp.ne.s32.totalorder %s266, %s267
      %p279 = scmp.eq.s32.totalorder %s41, 7
      %p280 = por %p278, %p279
      %p282 = scmp.ne.s32.totalorder %s267, %s281
      %p283 = scmp.eq.s32.totalorder %s41, 0
      %p284 = por %p282, %p283
      %s286 = sadd.s32 %s285, 1
      %p289 = scmp.eq.s32.totalorder %s35, 7
      %p290 = scmp.ne.s32.totalorder %s285, %s287
      %p291 = scmp.eq.s32.totalorder %s35, 0
      %p292 = por %p290, %p291
      %p293 = scmp.ne.s32.totalorder %s285, %s287
      %p294 = scmp.eq.s32.totalorder %s40, 7
      %p295 = por %p293, %p294
      %p296 = scmp.ne.s32.totalorder %s287, %s288
      %p297 = scmp.eq.s32.totalorder %s40, 0
      %p298 = por %p296, %p297
      %p299 = scmp.ne.s32.totalorder %s287, %s288
      %p300 = scmp.eq.s32.totalorder %s41, 7
      %p301 = por %p299, %p300
      %p303 = scmp.ne.s32.totalorder %s288, %s302
      %p304 = scmp.eq.s32.totalorder %s41, 0
      %p305 = por %p303, %p304
      %s307 = sadd.s32 %s306, 1
      %p310 = scmp.eq.s32.totalorder %s35, 7
      %p311 = scmp.ne.s32.totalorder %s306, %s308
      %p312 = scmp.eq.s32.totalorder %s35, 0
      %p313 = por %p311, %p312
      %p314 = scmp.ne.s32.totalorder %s306, %s308
      %p315 = scmp.eq.s32.totalorder %s40, 7
      %p316 = por %p314, %p315
      %p317 = scmp.ne.s32.totalorder %s308, %s309
      %p318 = scmp.eq.s32.totalorder %s40, 0
      %p319 = por %p317, %p318
      %p320 = scmp.ne.s32.totalorder %s308, %s309
      %p321 = scmp.eq.s32.totalorder %s41, 7
      %p322 = por %p320, %p321
      %p324 = scmp.ne.s32.totalorder %s309, %s323
      %p325 = scmp.eq.s32.totalorder %s41, 0
      %p326 = por %p324, %p325
      %s328 = sadd.s32 %s327, 1
      %p331 = scmp.eq.s32.totalorder %s35, 7
      %p332 = scmp.ne.s32.totalorder %s327, %s329
      %p333 = scmp.eq.s32.totalorder %s35, 0
      %p334 = por %p332, %p333
      %p335 = scmp.ne.s32.totalorder %s327, %s329
      %p336 = scmp.eq.s32.totalorder %s40, 7
      %p337 = por %p335, %p336
      %p338 = scmp.ne.s32.totalorder %s329, %s330
      %p339 = scmp.eq.s32.totalorder %s40, 0
      %p340 = por %p338, %p339
      %p341 = scmp.ne.s32.totalorder %s329, %s330
      %p342 = scmp.eq.s32.totalorder %s41, 7
      %p343 = por %p341, %p342
      %p345 = scmp.ne.s32.totalorder %s330, %s344
      %p346 = scmp.eq.s32.totalorder %s41, 0
      %p347 = por %p345, %p346
      %s348 = ssub.s32 %s42, %s54
      %p349 = scmp.eq.s32.totalorder %s348, 0
      %s351 = sadd.s32 %s350, 1
      %s352 = scalar_select %p349, %s350, %s351
      %p355 = pneg %p349
      %p356 = scmp.eq.s32.totalorder %s35, 7
      %p357 = por %p355, %p356
      %p358 = scmp.ne.s32.totalorder %s350, %s353
      %p359 = scmp.eq.s32.totalorder %s35, 0
      %p360 = por %p358, %p359
      %p361 = scmp.ne.s32.totalorder %s350, %s353
      %p362 = scmp.eq.s32.totalorder %s40, 7
      %p363 = por %p361, %p362
      %p364 = scmp.ne.s32.totalorder %s353, %s354
      %p365 = scmp.eq.s32.totalorder %s40, 0
      %p366 = por %p364, %p365
      %p367 = scmp.ne.s32.totalorder %s353, %s354
      %p368 = scmp.eq.s32.totalorder %s41, 7
      %p369 = por %p367, %p368
      %p371 = scmp.ne.s32.totalorder %s354, %s370
      %p372 = scmp.eq.s32.totalorder %s41, 0
      %p373 = por %p371, %p372
      %p374 = scmp.le.s32.totalorder 1, %s35
      %p375 = scmp.lt.s32.totalorder %s35, 9
      %p376 = pnand %p374, %p375
      %p377 = pneg %p376
      // Predicated region
      $region9: #{gpt2_forward.3} parent=5 // pred_check
        _
      $region10: #{gpt2_forward.3} parent=5 // pred_check_branch
        %379 = sbr.rel (%p376) target = $region12
      $region11: #{gpt2_forward.3} parent=5 // pred_region
        %s380 = ssub.s32 %s35, 1
        // Predicated region
        $region13: #{gpt2_forward.3} parent=11 // pred_check
          %p381 = pneg %p94
        $region14: #{gpt2_forward.3} parent=11 // pred_check_branch
          %383 = sbr.rel (%p381) target = $region16
        $region15: #{gpt2_forward.3} parent=11 // pred_region
          %s385 = ssub.s32 16, 16
          %386 = vsyncadd [#allocation8], %s385
          %s388 = sshll.u32 [#allocation7], 4
          %s389 = int_to_ptr.vmem [resolvable:$true] %s388
          %391 = dma.hbm_to_vmem [thread:$0]  %s1, 16, %s389, [#allocation8]
        $region16: #{gpt2_forward.3} parent=11 // pred_fallthru
          _
        // Predicated region
        $region17: #{gpt2_forward.3} parent=11 // pred_check
          %p392 = pneg %p115
        $region18: #{gpt2_forward.3} parent=11 // pred_check_branch
          %394 = sbr.rel (%p392) target = $region20
        $region19: #{gpt2_forward.3} parent=11 // pred_region
          %s396 = ssub.s32 16, 16
          %397 = vsyncadd [#allocation8], %s396
          %s399 = sshll.u32 [#allocation9], 4
          %s400 = int_to_ptr.vmem [resolvable:$true] %s399
          %402 = dma.hbm_to_vmem [thread:$0]  %s2, 16, %s400, [#allocation8]
        $region20: #{gpt2_forward.3} parent=11 // pred_fallthru
          _
        // Predicated region
        $region21: #{gpt2_forward.3} parent=11 // pred_check
          %p403 = pneg %p214
        $region22: #{gpt2_forward.3} parent=11 // pred_check_branch
          %405 = sbr.rel (%p403) target = $region24
        $region23: #{gpt2_forward.3} parent=11 // pred_region
          %s407 = ssub.s32 16, 16
          %408 = vsyncadd [#allocation14], %s407
          %s410 = sshll.u32 [#allocation15], 4
          %s411 = int_to_ptr.vmem [resolvable:$true] %s410
          %413 = dma.hbm_to_vmem [thread:$0]  %s6, 16, %s411, [#allocation14]
        $region24: #{gpt2_forward.3} parent=11 // pred_fallthru
          _
        // Predicated region
        $region25: #{gpt2_forward.3} parent=11 // pred_check
          %p414 = pneg %p235
        $region26: #{gpt2_forward.3} parent=11 // pred_check_branch
          %416 = sbr.rel (%p414) target = $region28
        $region27: #{gpt2_forward.3} parent=11 // pred_region
          %s418 = ssub.s32 16, 16
          %419 = vsyncadd [#allocation17], %s418
          %s421 = sshll.u32 [#allocation16], 4
          %s422 = int_to_ptr.vmem [resolvable:$true] %s421
          %424 = dma.hbm_to_vmem [thread:$0]  %s7, 16, %s422, [#allocation17]
        $region28: #{gpt2_forward.3} parent=11 // pred_fallthru
          _
        // Predicated region
        $region29: #{gpt2_forward.3} parent=11 // pred_check
          %p425 = pneg %p256
        $region30: #{gpt2_forward.3} parent=11 // pred_check_branch
          %427 = sbr.rel (%p425) target = $region32
        $region31: #{gpt2_forward.3} parent=11 // pred_region
          %s429 = ssub.s32 16, 16
          %430 = vsyncadd [#allocation17], %s429
          %s432 = sshll.u32 [#allocation18], 4
          %s433 = int_to_ptr.vmem [resolvable:$true] %s432
          %435 = dma.hbm_to_vmem [thread:$0]  %s8, 16, %s433, [#allocation17]
        $region32: #{gpt2_forward.3} parent=11 // pred_fallthru
          _
        // Predicated region
        $region33: #{gpt2_forward.3} parent=11 // pred_check
          %p436 = pneg %p277
        $region34: #{gpt2_forward.3} parent=11 // pred_check_branch
          %438 = sbr.rel (%p436) target = $region36
        $region35: #{gpt2_forward.3} parent=11 // pred_region
          %s440 = ssub.s32 256, 256
          %441 = vsyncadd [#allocation20], %s440
          %s442 = sshll.u32 [#allocation19], 4
          %s443 = int_to_ptr.vmem [resolvable:$true] %s442
          %448 = dma.hbm_to_vmem [thread:$0]  %s9, 256, %s443, [#allocation20], 64, 64, 4
        $region36: #{gpt2_forward.3} parent=11 // pred_fallthru
          _
        // Predicated region
        $region37: #{gpt2_forward.3} parent=11 // pred_check
          %p449 = pneg %p298
        $region38: #{gpt2_forward.3} parent=11 // pred_check_branch
          %451 = sbr.rel (%p449) target = $region40
        $region39: #{gpt2_forward.3} parent=11 // pred_region
          %s453 = ssub.s32 16, 16
          %454 = vsyncadd [#allocation20], %s453
          %s456 = sshll.u32 [#allocation21], 4
          %s457 = int_to_ptr.vmem [resolvable:$true] %s456
          %459 = dma.hbm_to_vmem [thread:$0]  %s10, 16, %s457, [#allocation20]
        $region40: #{gpt2_forward.3} parent=11 // pred_fallthru
          _
        // Predicated region
        $region41: #{gpt2_forward.3} parent=11 // pred_check
          %p460 = pneg %p319
        $region42: #{gpt2_forward.3} parent=11 // pred_check_branch
          %462 = sbr.rel (%p460) target = $region44
        $region43: #{gpt2_forward.3} parent=11 // pred_region
          %s464 = ssub.s32 512, 512
          %465 = vsyncadd [#allocation23], %s464
          %s466 = sshll.u32 [#allocation22], 4
          %s467 = int_to_ptr.vmem [resolvable:$true] %s466
          %472 = dma.hbm_to_vmem [thread:$0]  %s11, 512, %s467, [#allocation23], 64, 64, 4
        $region44: #{gpt2_forward.3} parent=11 // pred_fallthru
          _
        // Predicated region
        $region45: #{gpt2_forward.3} parent=11 // pred_check
          %p473 = pneg %p340
        $region46: #{gpt2_forward.3} parent=11 // pred_check_branch
          %475 = sbr.rel (%p473) target = $region48
        $region47: #{gpt2_forward.3} parent=11 // pred_region
          %s477 = ssub.s32 16, 16
          %478 = vsyncadd [#allocation23], %s477
          %s480 = sshll.u32 [#allocation24], 4
          %s481 = int_to_ptr.vmem [resolvable:$true] %s480
          %483 = dma.hbm_to_vmem [thread:$0]  %s12, 16, %s481, [#allocation23]
        $region48: #{gpt2_forward.3} parent=11 // pred_fallthru
          _
      $region12: #{gpt2_forward.3} parent=5 // pred_fallthru
        _
      %p484 = scmp.lt.s32.totalorder %s35, 8
      // Predicated region
      $region49: #{gpt2_forward.3} parent=5 // pred_check
        %p485 = pneg %p484
      $region50: #{gpt2_forward.3} parent=5 // pred_check_branch
        %487 = sbr.rel (%p485) target = $region52
      $region51: #{gpt2_forward.3} parent=5 // pred_region
        // Predicated region
        $region53: #{gpt2_forward.3} parent=51 // pred_check
          %p488 = pneg %p67
        $region54: #{gpt2_forward.3} parent=51 // pred_check_branch
          %490 = sbr.rel (%p488) target = $region56
        $region55: #{gpt2_forward.3} parent=51 // pred_region
          %s491 = sand.u32 %s57, 1
          %s492 = scalar_lea.sflag [#allocation5], %s491
          %s493 = sand.u32 %s57, 1
          %s494 = smul.addr %s493, 8
          %s495 = scalar_lea.vmem [#allocation4], %s494
          %s497 = ssub.s32 128, 128
          %498 = vsyncadd %s492, %s497
          %s499 = smul.addr %s42, 128
          %s500 = scalar_lea.hbm %s0, %s499
          %s502 = sshll.u32 %s495, 4
          %s503 = int_to_ptr.vmem [resolvable:$true] %s502
          %505 = dma.hbm_to_vmem [thread:$0]  %s500, 128, %s503, %s492
        $region56: #{gpt2_forward.3} parent=51 // pred_fallthru
          _
        // Predicated region
        $region57: #{gpt2_forward.3} parent=51 // pred_check
          %p506 = pneg %p135
        $region58: #{gpt2_forward.3} parent=51 // pred_check_branch
          %508 = sbr.rel (%p506) target = $region60
        $region59: #{gpt2_forward.3} parent=51 // pred_region
          %s509 = sand.u32 %s35, 1
          %s510 = scalar_lea.sflag [#allocation11], %s509
          %s511 = sand.u32 %s125, 1
          %s512 = smul.addr %s511, 16
          %s513 = scalar_lea.vmem [#allocation10], %s512
          %s515 = ssub.s32 256, 256
          %516 = vsyncadd %s510, %s515
          %s517 = smul.addr %s43, 4
          %s518 = smul.addr %s517, 64
          %s519 = scalar_lea.hbm %s3, %s518
          %s520 = sshll.u32 %s513, 4
          %s521 = int_to_ptr.vmem [resolvable:$true] %s520
          %526 = dma.hbm_to_vmem [thread:$0]  %s519, 256, %s521, %s510, 64, 64, 4
        $region60: #{gpt2_forward.3} parent=51 // pred_fallthru
          _
        // Predicated region
        $region61: #{gpt2_forward.3} parent=51 // pred_check
          %p527 = pneg %p161
        $region62: #{gpt2_forward.3} parent=51 // pred_check_branch
          %529 = sbr.rel (%p527) target = $region64
        $region63: #{gpt2_forward.3} parent=51 // pred_region
          %s530 = sand.u32 %s35, 1
          %s531 = scalar_lea.sflag [#allocation11], %s530
          %s532 = sand.u32 %s151, 1
          %s533 = scalar_lea.vmem [#allocation12], %s532
          %s535 = ssub.s32 16, 16
          %536 = vsyncadd %s531, %s535
          %s537 = smul.addr %s43, 16
          %s538 = scalar_lea.hbm %s4, %s537
          %s540 = sshll.u32 %s533, 4
          %s541 = int_to_ptr.vmem [resolvable:$true] %s540
          %543 = dma.hbm_to_vmem [thread:$0]  %s538, 16, %s541, %s531
        $region64: #{gpt2_forward.3} parent=51 // pred_fallthru
          _
        // Predicated region
        $region65: #{gpt2_forward.3} parent=51 // pred_check
          %p544 = pneg %p187
        $region66: #{gpt2_forward.3} parent=51 // pred_check_branch
          %546 = sbr.rel (%p544) target = $region68
        $region67: #{gpt2_forward.3} parent=51 // pred_region
          %s547 = sand.u32 %s35, 1
          %s548 = scalar_lea.sflag [#allocation14], %s547
          %s549 = sand.u32 %s177, 1
          %s550 = smul.addr %s549, 4
          %s551 = scalar_lea.vmem [#allocation13], %s550
          %s553 = ssub.s32 64, 64
          %554 = vsyncadd %s548, %s553
          %s555 = smul.addr %s43, 64
          %s556 = scalar_lea.hbm %s5, %s555
          %s558 = sshll.u32 %s551, 4
          %s559 = int_to_ptr.vmem [resolvable:$true] %s558
          %561 = dma.hbm_to_vmem [thread:$0]  %s556, 64, %s559, %s548
        $region68: #{gpt2_forward.3} parent=51 // pred_fallthru
          _
      $region52: #{gpt2_forward.3} parent=5 // pred_fallthru
        _
      %p562 = scmp.le.s32.totalorder 1, %s35
      %p563 = scmp.lt.s32.totalorder %s35, 9
      %p564 = pnand %p562, %p563
      %p565 = pneg %p564
      // Predicated region
      $region69: #{gpt2_forward.3} parent=5 // pred_check
        _
      $region70: #{gpt2_forward.3} parent=5 // pred_check_branch
        %567 = sbr.rel (%p564) target = $region72
      $region71: #{gpt2_forward.3} parent=5 // pred_region
        %s568 = ssub.s32 %s35, 1
        %s569 = sand.u32 %s60, 1
        %s570 = scalar_lea.sflag [#allocation5], %s569
        %s571 = sand.u32 %s60, 1
        %s572 = smul.addr %s571, 8
        %s573 = scalar_lea.vmem [#allocation4], %s572
        // Predicated region
        $region73: #{gpt2_forward.3} parent=71 // pred_check
          %p574 = pneg %p73
        $region74: #{gpt2_forward.3} parent=71 // pred_check_branch
          %576 = sbr.rel (%p574) target = $region76
        $region75: #{gpt2_forward.3} parent=71 // pred_region
          %577 = dma.done %s570, 128
        $region76: #{gpt2_forward.3} parent=71 // pred_fallthru
          _
        // Predicated region
        $region77: #{gpt2_forward.3} parent=71 // pred_check
          %p578 = pneg %p94
        $region78: #{gpt2_forward.3} parent=71 // pred_check_branch
          %580 = sbr.rel (%p578) target = $region80
        $region79: #{gpt2_forward.3} parent=71 // pred_region
          %581 = dma.done [#allocation8], 16
        $region80: #{gpt2_forward.3} parent=71 // pred_fallthru
          _
        // Predicated region
        $region81: #{gpt2_forward.3} parent=71 // pred_check
          %p582 = pneg %p115
        $region82: #{gpt2_forward.3} parent=71 // pred_check_branch
          %584 = sbr.rel (%p582) target = $region84
        $region83: #{gpt2_forward.3} parent=71 // pred_region
          %585 = dma.done [#allocation8], 16
        $region84: #{gpt2_forward.3} parent=71 // pred_fallthru
          _
        %s586 = sand.u32 %s40, 1
        %s587 = scalar_lea.sflag [#allocation11], %s586
        %s588 = sand.u32 %s128, 1
        %s589 = smul.addr %s588, 16
        %s590 = scalar_lea.vmem [#allocation10], %s589
        // Predicated region
        $region85: #{gpt2_forward.3} parent=71 // pred_check
          %p591 = pneg %p141
        $region86: #{gpt2_forward.3} parent=71 // pred_check_branch
          %593 = sbr.rel (%p591) target = $region88
        $region87: #{gpt2_forward.3} parent=71 // pred_region
          %594 = dma.done %s587, 256
        $region88: #{gpt2_forward.3} parent=71 // pred_fallthru
          _
        %s595 = sand.u32 %s40, 1
        %s596 = scalar_lea.sflag [#allocation11], %s595
        %s597 = sand.u32 %s154, 1
        %s598 = scalar_lea.vmem [#allocation12], %s597
        // Predicated region
        $region89: #{gpt2_forward.3} parent=71 // pred_check
          %p599 = pneg %p167
        $region90: #{gpt2_forward.3} parent=71 // pred_check_branch
          %601 = sbr.rel (%p599) target = $region92
        $region91: #{gpt2_forward.3} parent=71 // pred_region
          %602 = dma.done %s596, 16
        $region92: #{gpt2_forward.3} parent=71 // pred_fallthru
          _
        %s603 = sand.u32 %s40, 1
        %s604 = scalar_lea.sflag [#allocation14], %s603
        %s605 = sand.u32 %s180, 1
        %s606 = smul.addr %s605, 4
        %s607 = scalar_lea.vmem [#allocation13], %s606
        // Predicated region
        $region93: #{gpt2_forward.3} parent=71 // pred_check
          %p608 = pneg %p193
        $region94: #{gpt2_forward.3} parent=71 // pred_check_branch
          %610 = sbr.rel (%p608) target = $region96
        $region95: #{gpt2_forward.3} parent=71 // pred_region
          %611 = dma.done %s604, 64
        $region96: #{gpt2_forward.3} parent=71 // pred_fallthru
          _
        // Predicated region
        $region97: #{gpt2_forward.3} parent=71 // pred_check
          %p612 = pneg %p214
        $region98: #{gpt2_forward.3} parent=71 // pred_check_branch
          %614 = sbr.rel (%p612) target = $region100
        $region99: #{gpt2_forward.3} parent=71 // pred_region
          %615 = dma.done [#allocation14], 16
        $region100: #{gpt2_forward.3} parent=71 // pred_fallthru
          _
        // Predicated region
        $region101: #{gpt2_forward.3} parent=71 // pred_check
          %p616 = pneg %p235
        $region102: #{gpt2_forward.3} parent=71 // pred_check_branch
          %618 = sbr.rel (%p616) target = $region104
        $region103: #{gpt2_forward.3} parent=71 // pred_region
          %619 = dma.done [#allocation17], 16
        $region104: #{gpt2_forward.3} parent=71 // pred_fallthru
          _
        // Predicated region
        $region105: #{gpt2_forward.3} parent=71 // pred_check
          %p620 = pneg %p256
        $region106: #{gpt2_forward.3} parent=71 // pred_check_branch
          %622 = sbr.rel (%p620) target = $region108
        $region107: #{gpt2_forward.3} parent=71 // pred_region
          %623 = dma.done [#allocation17], 16
        $region108: #{gpt2_forward.3} parent=71 // pred_fallthru
          _
        // Predicated region
        $region109: #{gpt2_forward.3} parent=71 // pred_check
          %p624 = pneg %p277
        $region110: #{gpt2_forward.3} parent=71 // pred_check_branch
          %626 = sbr.rel (%p624) target = $region112
        $region111: #{gpt2_forward.3} parent=71 // pred_region
          %627 = dma.done [#allocation20], 256
        $region112: #{gpt2_forward.3} parent=71 // pred_fallthru
          _
        // Predicated region
        $region113: #{gpt2_forward.3} parent=71 // pred_check
          %p628 = pneg %p298
        $region114: #{gpt2_forward.3} parent=71 // pred_check_branch
          %630 = sbr.rel (%p628) target = $region116
        $region115: #{gpt2_forward.3} parent=71 // pred_region
          %631 = dma.done [#allocation20], 16
        $region116: #{gpt2_forward.3} parent=71 // pred_fallthru
          _
        // Predicated region
        $region117: #{gpt2_forward.3} parent=71 // pred_check
          %p632 = pneg %p319
        $region118: #{gpt2_forward.3} parent=71 // pred_check_branch
          %634 = sbr.rel (%p632) target = $region120
        $region119: #{gpt2_forward.3} parent=71 // pred_region
          %635 = dma.done [#allocation23], 512
        $region120: #{gpt2_forward.3} parent=71 // pred_fallthru
          _
        // Predicated region
        $region121: #{gpt2_forward.3} parent=71 // pred_check
          %p636 = pneg %p340
        $region122: #{gpt2_forward.3} parent=71 // pred_check_branch
          %638 = sbr.rel (%p636) target = $region124
        $region123: #{gpt2_forward.3} parent=71 // pred_region
          %639 = dma.done [#allocation23], 16
        $region124: #{gpt2_forward.3} parent=71 // pred_fallthru
          _
        %s640 = sand.u32 %s60, 1
        %s641 = scalar_lea.sflag [#allocation5], %s640
        %s642 = sand.u32 %s60, 1
        %s643 = smul.addr %s642, 8
        %s644 = scalar_lea.vmem [#allocation4], %s643
        %p645 = pneg %p73
        %p646 = pneg %p70
        %p647 = pneg %p94
        %p648 = pneg %p91
        %p649 = pneg %p115
        %p650 = pneg %p112
        %s651 = sand.u32 %s40, 1
        %s652 = scalar_lea.sflag [#allocation11], %s651
        %s653 = sand.u32 %s128, 1
        %s654 = smul.addr %s653, 16
        %s655 = scalar_lea.vmem [#allocation10], %s654
        %p656 = pneg %p141
        %p657 = pneg %p138
        %s658 = sand.u32 %s40, 1
        %s659 = scalar_lea.sflag [#allocation11], %s658
        %s660 = sand.u32 %s154, 1
        %s661 = scalar_lea.vmem [#allocation12], %s660
        %p662 = pneg %p167
        %p663 = pneg %p164
        %s664 = sand.u32 %s40, 1
        %s665 = scalar_lea.sflag [#allocation14], %s664
        %s666 = sand.u32 %s180, 1
        %s667 = smul.addr %s666, 4
        %s668 = scalar_lea.vmem [#allocation13], %s667
        %p669 = pneg %p193
        %p670 = pneg %p190
        %p671 = pneg %p214
        %p672 = pneg %p211
        %p673 = pneg %p235
        %p674 = pneg %p232
        %p675 = pneg %p256
        %p676 = pneg %p253
        %p677 = pneg %p277
        %p678 = pneg %p274
        %p679 = pneg %p298
        %p680 = pneg %p295
        %p681 = pneg %p319
        %p682 = pneg %p316
        %p683 = pneg %p340
        %p684 = pneg %p337
        %p685 = pneg %p366
        %p686 = pneg %p363
        %s687 = sand.u32 %s353, 1
        %s688 = scalar_lea.sflag [#allocation6], %s687
        %s689 = sand.u32 %s353, 1
        %s690 = smul.addr %s689, 8
        %s691 = scalar_lea.vmem [#allocation25], %s690
        %p693 = scmp.eq.s32.totalorder %s45, 0
        // Predicated region
        $region125: #{gpt2_forward.3} parent=71 // pred_check
          %p694 = pneg %p693
        $region126: #{gpt2_forward.3} parent=71 // pred_check_branch
          %696 = sbr.rel (%p694) target = $region128
        $region127: #{gpt2_forward.3} parent=71 // pred_region
          %v697 = vld [vmem:[%s573] sm:$0xff]
          %v698 = vld [vmem:[#allocation7] sm:$0x1]
          %v699 = vld [vmem:[#allocation9] sm:$0x1]
          %vm700 = vcmask 261120
          %v701 = vsel %vm700, %v697, 0.0
          %702 = vadd.xlane.f32.xlu0 %v701
          %v703 = vpop.xlane.xlu0 %702
          %v704 = vrcp.pop 32.0
          %v705 = vmul.f32 %v703, %v704
          %v706 = vsub.f32 %v697, %v705
          %v707 = vmul.f32 %v706, %v706
          %v708 = vsel %vm700, %v707, 0.0
          %709 = vadd.xlane.f32.xlu0 %v708
          %v710 = vpop.xlane.xlu0 %709
          %v711 = vmul.f32 %v710, %v704
          %v712 = vadd.f32 %v711, 1e-05
          %v713 = vrsqrt.pop %v712
          %v714 = vmul.f32 %v706, %v713
          %v716 = vlaneseq
          %v717 = vshrl.u32 %v716, 7
          %v718 = vsub.s32 0, %v717
          %v719 = vrot.slane %v698, %v718
          %v721 = vmul.f32 %v714, %v719
          %v723 = vlaneseq
          %v724 = vshrl.u32 %v723, 7
          %v725 = vsub.s32 0, %v724
          %v726 = vrot.slane %v699, %v725
          %v728 = vadd.f32 %v721, %v726
          %v729 = vpack.c.bf16 %v728, %v728
          %vm730 = vcmask 257024
          %731 = vst.msk [vmem:[#allocation3] sm:$0xf] %vm730, %v729
          %v732 = vld [vmem:[#allocation15] sm:$0x1]
          %v734 = vlaneseq
          %v735 = vshrl.u32 %v734, 7
          %v736 = vsub.s32 0, %v735
          %v737 = vrot.slane %v732, %v736
          %v739 = vadd.f32 %v697, %v737
          %740 = vst.msk [vmem:[#allocation2] sm:$0xff] %vm700, %v739
        $region128: #{gpt2_forward.3} parent=71 // pred_fallthru
          _
        %v741 = vld [vmem:[#allocation3] sm:$0xf]
        %v742 = vld [vmem:[%s590] sm:$0xf]
        %v743 = vld [vmem:[%s590 + $0x4] sm:$0xf]
        %v744 = vld [vmem:[%s590 + $0x8] sm:$0xf]
        %v745 = vld [vmem:[%s590 + $0xc] sm:$0xf]
        %v746 = vld [vmem:[%s598] sm:$0x1]
        %v748 = vlaneseq
        %v749 = vshrl.u32 %v748, 7
        %v750 = vsub.s32 0, %v749
        %v751 = vrot.slane %v746, %v750
        %v757 = vunpack.c.l.b16 %v742
        %v758 = vunpack.c.l.b16 %v743
        %v759 = vunpack.c.l.b16 %v744
        %v760 = vunpack.c.l.b16 %v745
        %v761 = vpack.c.b16 %v758, %v757
        %v762 = vpack.c.b16 %v760, %v759
        %vm765 = vcmask 261120
        %v767 = vsel %vm765, %v741, 0
        %769 = vmatprep.subr.bf16.mxu0 0
        %770 = vmatpush1.bf16.msra.mxu0 %v761
        %771 = vmatprep.subr.bf16.mxu0 0
        %772 = vmatpush1.bf16.msra.mxu0 %v762
        %773 = vmatprep.subr.bf16.mxu0 0
        %774 = vmatpush1.bf16.msra.mxu0 0
        %775 = vmatprep.subr.bf16.mxu0 0
        %776 = vmatpush1.bf16.msra.mxu0 0
        %777 = vmatprep.subr.bf16.mxu0 0
        %778 = vmatpush1.bf16.msra.mxu0 0
        %779 = vmatprep.subr.bf16.mxu0 0
        %780 = vmatpush1.bf16.msra.mxu0 0
        %781 = vmatprep.subr.bf16.mxu0 0
        %782 = vmatpush1.bf16.msra.mxu0 0
        %783 = vmatprep.subr.bf16.mxu0 0
        %784 = vmatpush1.bf16.msra.mxu0 0
        %785 = vmatprep.subr.bf16.mxu0 0
        %786 = vmatpush1.bf16.msra.mxu0 0
        %787 = vmatprep.subr.bf16.mxu0 0
        %788 = vmatpush1.bf16.msra.mxu0 0
        %789 = vmatprep.subr.bf16.mxu0 0
        %790 = vmatpush1.bf16.msra.mxu0 0
        %791 = vmatprep.subr.bf16.mxu0 0
        %792 = vmatpush1.bf16.msra.mxu0 0
        %793 = vmatprep.subr.bf16.mxu0 0
        %794 = vmatpush1.bf16.msra.mxu0 0
        %795 = vmatprep.subr.bf16.mxu0 0
        %796 = vmatpush1.bf16.msra.mxu0 0
        %797 = vmatprep.subr.bf16.mxu0 0
        %798 = vmatpush1.bf16.msra.mxu0 0
        %799 = vmatprep.subr.bf16.mxu0 0
        %800 = vmatpush1.bf16.msra.mxu0 0
        %801 = vmatprep.mubr.bf16.mxu0 0
        %802 = vmatmul.mubr.bf16.gmra.mrb[0].mxu0 %v767
        %v803 = vpop.f32.mrb[0].mxu0
        %v804 = vadd.f32 %v751, %v803
        %v805 = vpop.f32.mrb[0].mxu0
        %v806 = vpop.f32.mrb[0].mxu0
        %v807 = vpop.f32.mrb[0].mxu0
        %808 = vdwg.mxu0
        %v809 = vmul.f32 %v804, 0.35355338
        %v810 = vpack.c.bf16 %v809, %v809
        %v811 = vpack.c.bf16 %v804, %v804
        %813 = vrot.lane.b32.xlu0 %v811, 120
        %v814 = vpop.permute.xlu0 %813
        %vm815 = vcmask 64512
        %v817 = vsel %vm815, %v810, 0
        %v820 = vsel %vm815, %v814, 0
        %822 = vmatprep.subr.bf16.mxu0 0
        %823 = vmatpush1.bf16.xpose.msra.mxu0 %v820
        %824 = vmatprep.subr.bf16.mxu0 0
        %825 = vmatpush1.bf16.xpose.msra.mxu0 0
        %826 = vmatprep.subr.bf16.mxu0 0
        %827 = vmatpush1.bf16.xpose.msra.mxu0 0
        %828 = vmatprep.subr.bf16.mxu0 0
        %829 = vmatpush1.bf16.xpose.msra.mxu0 0
        %830 = vmatprep.subr.bf16.mxu0 0
        %831 = vmatpush1.bf16.xpose.msra.mxu0 0
        %832 = vmatprep.subr.bf16.mxu0 0
        %833 = vmatpush1.bf16.xpose.msra.mxu0 0
        %834 = vmatprep.subr.bf16.mxu0 0
        %835 = vmatpush1.bf16.xpose.msra.mxu0 0
        %836 = vmatprep.subr.bf16.mxu0 0
        %837 = vmatpush1.bf16.xpose.msra.mxu0 0
        %838 = vmatprep.subr.bf16.mxu0 0
        %839 = vmatpush1.bf16.xpose.msra.mxu0 0
        %840 = vmatprep.subr.bf16.mxu0 0
        %841 = vmatpush1.bf16.xpose.msra.mxu0 0
        %842 = vmatprep.subr.bf16.mxu0 0
        %843 = vmatpush1.bf16.xpose.msra.mxu0 0
        %844 = vmatprep.subr.bf16.mxu0 0
        %845 = vmatpush1.bf16.xpose.msra.mxu0 0
        %846 = vmatprep.subr.bf16.mxu0 0
        %847 = vmatpush1.bf16.xpose.msra.mxu0 0
        %848 = vmatprep.subr.bf16.mxu0 0
        %849 = vmatpush1.bf16.xpose.msra.mxu0 0
        %850 = vmatprep.subr.bf16.mxu0 0
        %851 = vmatpush1.bf16.xpose.msra.mxu0 0
        %852 = vmatprep.subr.bf16.mxu0 0
        %853 = vmatpush1.bf16.xpose.msra.mxu0 0
        %854 = vmatprep.mubr.bf16.mxu0 0
        %855 = vmatmul.mubr.bf16.gmra.mrb[0].mxu0 %v817
        %v856 = vpop.f32.mrb[0].mxu0
        %v857 = vadd.f32 0.0, %v856
        %v858 = vpop.f32.mrb[0].mxu0
        %v859 = vpop.f32.mrb[0].mxu0
        %v860 = vpop.f32.mrb[0].mxu0
        %861 = vdwg.mxu0
        %v862 = vlaneseq
        %v863 = vshrl.u32 %v862, 7
        %v864 = vlaneseq
        %v865 = vand.u32 %v864, 127
        %vm866 = vcmp.le.s32.totalorder %v865, %v863
        %v867 = vsel %vm866, %v857, -inf
        %v868 = vsel %vm815, %v867, -inf
        %869 = vmax.xlane.f32.xlu0 %v868
        %v870 = vpop.xlane.xlu0 %869
        %v871 = vsub.f32 %v867, %v870
        %v872 = vmul.f32 %v871, 1.442695
        %v873 = vpow.pop %v872
        %v874 = vsel %vm815, %v873, 0.0
        %875 = vadd.xlane.f32.xlu0 %v874
        %v876 = vpop.xlane.xlu0 %875
        %v877 = vrcp.pop %v876
        %v878 = vmul.f32 %v873, %v877
        %v879 = vpack.c.bf16 %v878, %v878
        %880 = vrot.lane.b32.xlu0 %v811, 112
        %v881 = vpop.permute.xlu0 %880
        %v883 = vsel %vm815, %v879, 0
        %vm885 = vcmask 1043456
        %v887 = vsel %vm885, %v881, 0
        %889 = vmatprep.subr.bf16.mxu0 0
        %890 = vmatpush1.bf16.msra.mxu0 %v887
        %891 = vmatprep.subr.bf16.mxu0 0
        %892 = vmatpush1.bf16.msra.mxu0 0
        %893 = vmatprep.subr.bf16.mxu0 0
        %894 = vmatpush1.bf16.msra.mxu0 0
        %895 = vmatprep.subr.bf16.mxu0 0
        %896 = vmatpush1.bf16.msra.mxu0 0
        %897 = vmatprep.subr.bf16.mxu0 0
        %898 = vmatpush1.bf16.msra.mxu0 0
        %899 = vmatprep.subr.bf16.mxu0 0
        %900 = vmatpush1.bf16.msra.mxu0 0
        %901 = vmatprep.subr.bf16.mxu0 0
        %902 = vmatpush1.bf16.msra.mxu0 0
        %903 = vmatprep.subr.bf16.mxu0 0
        %904 = vmatpush1.bf16.msra.mxu0 0
        %905 = vmatprep.subr.bf16.mxu0 0
        %906 = vmatpush1.bf16.msra.mxu0 0
        %907 = vmatprep.subr.bf16.mxu0 0
        %908 = vmatpush1.bf16.msra.mxu0 0
        %909 = vmatprep.subr.bf16.mxu0 0
        %910 = vmatpush1.bf16.msra.mxu0 0
        %911 = vmatprep.subr.bf16.mxu0 0
        %912 = vmatpush1.bf16.msra.mxu0 0
        %913 = vmatprep.subr.bf16.mxu0 0
        %914 = vmatpush1.bf16.msra.mxu0 0
        %915 = vmatprep.subr.bf16.mxu0 0
        %916 = vmatpush1.bf16.msra.mxu0 0
        %917 = vmatprep.subr.bf16.mxu0 0
        %918 = vmatpush1.bf16.msra.mxu0 0
        %919 = vmatprep.subr.bf16.mxu0 0
        %920 = vmatpush1.bf16.msra.mxu0 0
        %921 = vmatprep.mubr.bf16.mxu0 0
        %922 = vmatmul.mubr.bf16.gmra.mrb[0].mxu0 %v883
        %v923 = vpop.f32.mrb[0].mxu0
        %v924 = vadd.f32 0.0, %v923
        %v925 = vpop.f32.mrb[0].mxu0
        %v926 = vpop.f32.mrb[0].mxu0
        %v927 = vpop.f32.mrb[0].mxu0
        %928 = vdwg.mxu0
        %v929 = vld [vmem:[#allocation2] sm:$0xff]
        %v930 = vpack.c.bf16 %v924, %v924
        %v931 = vld [vmem:[%s607] sm:$0xf]
        %v933 = vsel %vm815, %v930, 0
        %v936 = vsel %vm885, %v931, 0
        %938 = vmatprep.subr.bf16.mxu0 0
        %939 = vmatpush1.bf16.msra.mxu0 %v936
        %940 = vmatprep.subr.bf16.mxu0 0
        %941 = vmatpush1.bf16.msra.mxu0 0
        %942 = vmatprep.subr.bf16.mxu0 0
        %943 = vmatpush1.bf16.msra.mxu0 0
        %944 = vmatprep.subr.bf16.mxu0 0
        %945 = vmatpush1.bf16.msra.mxu0 0
        %946 = vmatprep.subr.bf16.mxu0 0
        %947 = vmatpush1.bf16.msra.mxu0 0
        %948 = vmatprep.subr.bf16.mxu0 0
        %949 = vmatpush1.bf16.msra.mxu0 0
        %950 = vmatprep.subr.bf16.mxu0 0
        %951 = vmatpush1.bf16.msra.mxu0 0
        %952 = vmatprep.subr.bf16.mxu0 0
        %953 = vmatpush1.bf16.msra.mxu0 0
        %954 = vmatprep.subr.bf16.mxu0 0
        %955 = vmatpush1.bf16.msra.mxu0 0
        %956 = vmatprep.subr.bf16.mxu0 0
        %957 = vmatpush1.bf16.msra.mxu0 0
        %958 = vmatprep.subr.bf16.mxu0 0
        %959 = vmatpush1.bf16.msra.mxu0 0
        %960 = vmatprep.subr.bf16.mxu0 0
        %961 = vmatpush1.bf16.msra.mxu0 0
        %962 = vmatprep.subr.bf16.mxu0 0
        %963 = vmatpush1.bf16.msra.mxu0 0
        %964 = vmatprep.subr.bf16.mxu0 0
        %965 = vmatpush1.bf16.msra.mxu0 0
        %966 = vmatprep.subr.bf16.mxu0 0
        %967 = vmatpush1.bf16.msra.mxu0 0
        %968 = vmatprep.subr.bf16.mxu0 0
        %969 = vmatpush1.bf16.msra.mxu0 0
        %970 = vmatprep.mubr.bf16.mxu0 0
        %971 = vmatmul.mubr.bf16.gmra.mrb[0].mxu0 %v933
        %v972 = vpop.f32.mrb[0].mxu0
        %v973 = vadd.f32 0.0, %v972
        %v974 = vpop.f32.mrb[0].mxu0
        %v975 = vpop.f32.mrb[0].mxu0
        %v976 = vpop.f32.mrb[0].mxu0
        %977 = vdwg.mxu0
        %v978 = vadd.f32 %v929, %v973
        %979 = vst.msk [vmem:[#allocation2] sm:$0xff] %vm765, %v978
        %p980 = scmp.eq.s32.totalorder %s45, 3
        // Predicated region
        $region129: #{gpt2_forward.3} parent=71 // pred_check
          %p981 = pneg %p980
        $region130: #{gpt2_forward.3} parent=71 // pred_check_branch
          %983 = sbr.rel (%p981) target = $region132
        $region131: #{gpt2_forward.3} parent=71 // pred_region
          %v984 = vld [vmem:[#allocation2] sm:$0xff]
          %v985 = vld [vmem:[#allocation16] sm:$0x1]
          %v986 = vld [vmem:[#allocation18] sm:$0x1]
          %v987 = vsel %vm765, %v984, 0.0
          %988 = vadd.xlane.f32.xlu0 %v987
          %v989 = vpop.xlane.xlu0 %988
          %v990 = vrcp.pop 32.0
          %v991 = vmul.f32 %v989, %v990
          %v992 = vsub.f32 %v984, %v991
          %v993 = vmul.f32 %v992, %v992
          %v994 = vsel %vm765, %v993, 0.0
          %995 = vadd.xlane.f32.xlu0 %v994
          %v996 = vpop.xlane.xlu0 %995
          %v997 = vmul.f32 %v996, %v990
          %v998 = vadd.f32 %v997, 1e-05
          %v999 = vrsqrt.pop %v998
          %v1000 = vmul.f32 %v992, %v999
          %v1002 = vlaneseq
          %v1003 = vshrl.u32 %v1002, 7
          %v1004 = vsub.s32 0, %v1003
          %v1005 = vrot.slane %v985, %v1004
          %v1007 = vmul.f32 %v1000, %v1005
          %v1009 = vlaneseq
          %v1010 = vshrl.u32 %v1009, 7
          %v1011 = vsub.s32 0, %v1010
          %v1012 = vrot.slane %v986, %v1011
          %v1014 = vadd.f32 %v1007, %v1012
          %v1015 = vpack.c.bf16 %v1014, %v1014
          %v1016 = vld [vmem:[#allocation19] sm:$0xf]
          %v1017 = vld [vmem:[#allocation19 + $0x4] sm:$0xf]
          %v1018 = vld [vmem:[#allocation19 + $0x8] sm:$0xf]
          %v1019 = vld [vmem:[#allocation19 + $0xc] sm:$0xf]
          %v1020 = vld [vmem:[#allocation21] sm:$0x1]
          %v1022 = vlaneseq
          %v1023 = vshrl.u32 %v1022, 7
          %v1024 = vsub.s32 0, %v1023
          %v1025 = vrot.slane %v1020, %v1024
          %v1031 = vunpack.c.l.b16 %v1016
          %v1032 = vunpack.c.l.b16 %v1017
          %v1033 = vunpack.c.l.b16 %v1018
          %v1034 = vunpack.c.l.b16 %v1019
          %v1035 = vpack.c.b16 %v1032, %v1031
          %v1036 = vpack.c.b16 %v1034, %v1033
          %v1040 = vsel %vm765, %v1015, 0
          %1042 = vmatprep.subr.bf16.mxu0 0
          %1043 = vmatpush1.bf16.msra.mxu0 %v1035
          %1044 = vmatprep.subr.bf16.mxu0 0
          %1045 = vmatpush1.bf16.msra.mxu0 %v1036
          %1046 = vmatprep.subr.bf16.mxu0 0
          %1047 = vmatpush1.bf16.msra.mxu0 0
          %1048 = vmatprep.subr.bf16.mxu0 0
          %1049 = vmatpush1.bf16.msra.mxu0 0
          %1050 = vmatprep.subr.bf16.mxu0 0
          %1051 = vmatpush1.bf16.msra.mxu0 0
          %1052 = vmatprep.subr.bf16.mxu0 0
          %1053 = vmatpush1.bf16.msra.mxu0 0
          %1054 = vmatprep.subr.bf16.mxu0 0
          %1055 = vmatpush1.bf16.msra.mxu0 0
          %1056 = vmatprep.subr.bf16.mxu0 0
          %1057 = vmatpush1.bf16.msra.mxu0 0
          %1058 = vmatprep.subr.bf16.mxu0 0
          %1059 = vmatpush1.bf16.msra.mxu0 0
          %1060 = vmatprep.subr.bf16.mxu0 0
          %1061 = vmatpush1.bf16.msra.mxu0 0
          %1062 = vmatprep.subr.bf16.mxu0 0
          %1063 = vmatpush1.bf16.msra.mxu0 0
          %1064 = vmatprep.subr.bf16.mxu0 0
          %1065 = vmatpush1.bf16.msra.mxu0 0
          %1066 = vmatprep.subr.bf16.mxu0 0
          %1067 = vmatpush1.bf16.msra.mxu0 0
          %1068 = vmatprep.subr.bf16.mxu0 0
          %1069 = vmatpush1.bf16.msra.mxu0 0
          %1070 = vmatprep.subr.bf16.mxu0 0
          %1071 = vmatpush1.bf16.msra.mxu0 0
          %1072 = vmatprep.subr.bf16.mxu0 0
          %1073 = vmatpush1.bf16.msra.mxu0 0
          %1074 = vmatprep.mubr.bf16.mxu0 0
          %1075 = vmatmul.mubr.bf16.gmra.mrb[0].mxu0 %v1040
          %v1076 = vpop.f32.mrb[0].mxu0
          %v1077 = vadd.f32 %v1025, %v1076
          %v1078 = vpop.f32.mrb[0].mxu0
          %v1079 = vpop.f32.mrb[0].mxu0
          %v1080 = vpop.f32.mrb[0].mxu0
          %1081 = vdwg.mxu0
          %v1082 = vmul.f32 %v1077, 0.5
          %v1083 = vmul.f32 %v1077, 0.70710677
          %v1084 = verf.f32.pop %v1083
          %v1085 = vadd.f32 %v1084, 1.0
          %v1086 = vmul.f32 %v1082, %v1085
          %v1087 = vpack.c.bf16 %v1086, %v1086
          %v1088 = vld [vmem:[#allocation22] sm:$0xf]
          %v1089 = vld [vmem:[#allocation22 + $0x4] sm:$0xf]
          %v1090 = vld [vmem:[#allocation22 + $0x8] sm:$0xf]
          %v1091 = vld [vmem:[#allocation22 + $0xc] sm:$0xf]
          %v1092 = vld [vmem:[#allocation22 + $0x10] sm:$0xf]
          %v1093 = vld [vmem:[#allocation22 + $0x14] sm:$0xf]
          %v1094 = vld [vmem:[#allocation22 + $0x18] sm:$0xf]
          %v1095 = vld [vmem:[#allocation22 + $0x1c] sm:$0xf]
          %v1096 = vld [vmem:[#allocation24] sm:$0x1]
          %v1098 = vlaneseq
          %v1099 = vshrl.u32 %v1098, 7
          %v1100 = vsub.s32 0, %v1099
          %v1101 = vrot.slane %v1096, %v1100
          %v1111 = vunpack.c.l.b16 %v1088
          %v1112 = vunpack.c.l.b16 %v1089
          %v1113 = vunpack.c.l.b16 %v1090
          %v1114 = vunpack.c.l.b16 %v1091
          %v1115 = vunpack.c.l.b16 %v1092
          %v1116 = vunpack.c.l.b16 %v1093
          %v1117 = vunpack.c.l.b16 %v1094
          %v1118 = vunpack.c.l.b16 %v1095
          %v1119 = vpack.c.b16 %v1112, %v1111
          %v1120 = vpack.c.b16 %v1114, %v1113
          %v1121 = vpack.c.b16 %v1116, %v1115
          %v1122 = vpack.c.b16 %v1118, %v1117
          %vm1127 = vcmask 523264
          %v1129 = vsel %vm1127, %v1087, 0
          %1131 = vmatprep.subr.bf16.mxu0 0
          %1132 = vmatpush1.bf16.msra.mxu0 %v1119
          %1133 = vmatprep.subr.bf16.mxu0 0
          %1134 = vmatpush1.bf16.msra.mxu0 %v1120
          %1135 = vmatprep.subr.bf16.mxu0 0
          %1136 = vmatpush1.bf16.msra.mxu0 %v1121
          %1137 = vmatprep.subr.bf16.mxu0 0
          %1138 = vmatpush1.bf16.msra.mxu0 %v1122
          %1139 = vmatprep.subr.bf16.mxu0 0
          %1140 = vmatpush1.bf16.msra.mxu0 0
          %1141 = vmatprep.subr.bf16.mxu0 0
          %1142 = vmatpush1.bf16.msra.mxu0 0
          %1143 = vmatprep.subr.bf16.mxu0 0
          %1144 = vmatpush1.bf16.msra.mxu0 0
          %1145 = vmatprep.subr.bf16.mxu0 0
          %1146 = vmatpush1.bf16.msra.mxu0 0
          %1147 = vmatprep.subr.bf16.mxu0 0
          %1148 = vmatpush1.bf16.msra.mxu0 0
          %1149 = vmatprep.subr.bf16.mxu0 0
          %1150 = vmatpush1.bf16.msra.mxu0 0
          %1151 = vmatprep.subr.bf16.mxu0 0
          %1152 = vmatpush1.bf16.msra.mxu0 0
          %1153 = vmatprep.subr.bf16.mxu0 0
          %1154 = vmatpush1.bf16.msra.mxu0 0
          %1155 = vmatprep.subr.bf16.mxu0 0
          %1156 = vmatpush1.bf16.msra.mxu0 0
          %1157 = vmatprep.subr.bf16.mxu0 0
          %1158 = vmatpush1.bf16.msra.mxu0 0
          %1159 = vmatprep.subr.bf16.mxu0 0
          %1160 = vmatpush1.bf16.msra.mxu0 0
          %1161 = vmatprep.subr.bf16.mxu0 0
          %1162 = vmatpush1.bf16.msra.mxu0 0
          %1163 = vmatprep.mubr.bf16.mxu0 0
          %1164 = vmatmul.mubr.bf16.gmra.mrb[0].mxu0 %v1129
          %v1165 = vpop.f32.mrb[0].mxu0
          %v1166 = vadd.f32 %v1101, %v1165
          %v1167 = vpop.f32.mrb[0].mxu0
          %v1168 = vpop.f32.mrb[0].mxu0
          %v1169 = vpop.f32.mrb[0].mxu0
          %1170 = vdwg.mxu0
          %v1171 = vadd.f32 %v984, %v1166
          %1172 = vst.msk [vmem:[%s691] sm:$0xff] %vm765, %v1171
        $region132: #{gpt2_forward.3} parent=71 // pred_fallthru
          _
        %s1173 = sand.u32 %s353, 1
        %s1174 = scalar_lea.sflag [#allocation6], %s1173
        %s1175 = sand.u32 %s353, 1
        %s1176 = smul.addr %s1175, 8
        %s1177 = scalar_lea.vmem [#allocation25], %s1176
        // Predicated region
        $region133: #{gpt2_forward.3} parent=71 // pred_check
          %p1178 = pneg %p363
        $region134: #{gpt2_forward.3} parent=71 // pred_check_branch
          %1180 = sbr.rel (%p1178) target = $region136
        $region135: #{gpt2_forward.3} parent=71 // pred_region
          %s1182 = ssub.s32 128, 128
          %1183 = vsyncadd %s1174, %s1182
          %s1184 = smul.addr %s44, 128
          %s1185 = scalar_lea.hbm %s13, %s1184
          %s1187 = sshll.u32 %s1177, 4
          %s1188 = int_to_ptr.vmem [resolvable:$true] %s1187
          %1190 = dma.vmem_to_hbm [thread:$0]  %s1188, 128, %s1185, %s1174
        $region136: #{gpt2_forward.3} parent=71 // pred_fallthru
          _
      $region72: #{gpt2_forward.3} parent=5 // pred_fallthru
        _
      %p1191 = scmp.le.s32.totalorder 2, %s35
      // Predicated region
      $region137: #{gpt2_forward.3} parent=5 // pred_check
        %p1192 = pneg %p1191
      $region138: #{gpt2_forward.3} parent=5 // pred_check_branch
        %1194 = sbr.rel (%p1192) target = $region140
      $region139: #{gpt2_forward.3} parent=5 // pred_region
        %s1195 = ssub.s32 %s35, 2
        // Predicated region
        $region141: #{gpt2_forward.3} parent=139 // pred_check
          %p1196 = pneg %p369
        $region142: #{gpt2_forward.3} parent=139 // pred_check_branch
          %1198 = sbr.rel (%p1196) target = $region144
        $region143: #{gpt2_forward.3} parent=139 // pred_region
          %s1199 = sand.u32 %s354, 1
          %s1200 = scalar_lea.sflag [#allocation6], %s1199
          %s1201 = sand.u32 %s354, 1
          %s1202 = smul.addr %s1201, 8
          %s1203 = scalar_lea.vmem [#allocation25], %s1202
          %1204 = dma.done %s1200, 128
        $region144: #{gpt2_forward.3} parent=139 // pred_fallthru
          _
      $region140: #{gpt2_forward.3} parent=5 // pred_fallthru
        _
    $region6: #{gpt2_forward.3} parent=1 // loop_footer
      %s39 = sadd.s32 1, %s35
    $region7: #{gpt2_forward.3} parent=1 // loop_footer_branch
      %34 = sbr.rel target = $region3
    $region8: #{gpt2_forward.3} parent=1 // loop_exit
      _
    %1205 = vsyncpa [#allocation5], 1
    %s1206 = scalar_lea.sflag [#allocation5], 1
    %1207 = vsyncpa %s1206, 1
    %1208 = vsyncpa [#allocation8], 1
    %1209 = vsyncpa [#allocation11], 1
    %s1210 = scalar_lea.sflag [#allocation11], 1
    %1211 = vsyncpa %s1210, 1
    %1212 = vsyncpa [#allocation14], 1
    %s1213 = scalar_lea.sflag [#allocation14], 1
    %1214 = vsyncpa %s1213, 1
    %1215 = vsyncpa [#allocation17], 1
    %1216 = vsyncpa [#allocation20], 1
    %1217 = vsyncpa [#allocation23], 1
    %1218 = vsyncpa [#allocation6], 1
    %s1219 = scalar_lea.sflag [#allocation6], 1
    %1220 = vsyncpa %s1219, 1

</llo_original>
